<compile_context>
chip_gen: v5e
topology: v5e:2x2
jax: 0.10.0
libtpu: 0.0.40
codegen_flags: <defaults>
</compile_context>

<pallas_src>
import functools

import jax
import jax.numpy as jnp
from jax.experimental import pallas as pl
from jax.experimental.pallas import tpu as pltpu

BN_EPS = 1e-5


def _round_up(x, m):
    return (x + m - 1) // m * m


# -----------------------------------------------------------------------------
# Fused Conv(3x3, pad=1) + BatchNorm(train) + ReLU + MaxPool(2x2) kernel.
#   w_ref:        (8, Kp)       Cout padded to 8, K = 9*Cin padded to mult-of-8
#   g_ref/b_ref:  (8, 1)        BN gamma / beta (padded)
#   pXY_ref:      (Kp, TM)      im2col patches for pool-phase (X, Y), lanes = pooled pos
#   o_ref:        (8, TM)       pooled, normalized, ReLU'd activations (lane-dense)
# Grid = (2 passes, num_M_tiles). Pass 0 accumulates per-channel sum / sum-of-squares
# across ALL tiles (exact full-batch statistics); pass 1 re-runs the matmuls and applies
# normalize + ReLU + 2x2 max-pool, storing the lane-dense pooled tile.
# -----------------------------------------------------------------------------
def _conv_bn_relu_pool_kernel(w_ref, g_ref, b_ref,
                              p00_ref, p01_ref, p10_ref, p11_ref,
                              o_ref, sum_ref, ssq_ref, *, inv_count, eps):
    pas = pl.program_id(0)      # 0 = stats pass, 1 = normalize/pool/store pass

    @pl.when(jnp.logical_and(pas == 0, pl.program_id(1) == 0))
    def _init():
        sum_ref[...] = jnp.zeros_like(sum_ref)
        ssq_ref[...] = jnp.zeros_like(ssq_ref)

    w = w_ref[...]                                                       # (8, Kp)
    # Conv output at the 4 pool-window positions of every pooled pixel (MXU, f32 acc).
    # No conv bias: it is cancelled by the BN mean subtraction.
    y00 = jnp.dot(w, p00_ref[...], preferred_element_type=jnp.float32)   # (8, TM)
    y01 = jnp.dot(w, p01_ref[...], preferred_element_type=jnp.float32)
    y10 = jnp.dot(w, p10_ref[...], preferred_element_type=jnp.float32)
    y11 = jnp.dot(w, p11_ref[...], preferred_element_type=jnp.float32)

    @pl.when(pas == 0)
    def _stats():
        s = y00 + y01 + y10 + y11
        q = y00 * y00 + y01 * y01 + y10 * y10 + y11 * y11
        sum_ref[...] += jnp.sum(s, axis=1, keepdims=True)                # (8, 1)
        ssq_ref[...] += jnp.sum(q, axis=1, keepdims=True)

    @pl.when(pas == 1)
    def _normalize_pool():
        mean = sum_ref[...] * inv_count                                  # (8, 1)
        var = jnp.maximum(ssq_ref[...] * inv_count - mean * mean, 0.0)   # biased var
        scale = g_ref[...] * jax.lax.rsqrt(var + eps)
        shift = b_ref[...] - mean * scale
        # Scale applied per tap (sign-safe for gamma<0), common shift added once;
        # ReLU commutes with max, so ReLU-then-pool == pool-then-ReLU.
        z = jnp.maximum(jnp.maximum(y00 * scale, y01 * scale),
                        jnp.maximum(y10 * scale, y11 * scale)) + shift
        o_ref[...] = jnp.maximum(z, 0.0)


# ------------------------------ glue: patch building -------------------------
def _phase_patches(x_cnhw, pi, pj):
    """im2col patches for conv outputs at positions (2i+pi, 2j+pj): (9*Cin, N*Hp*Wp)."""
    C, N, H, W = x_cnhw.shape
    Hp, Wp = H // 2, W // 2
    xp = jnp.pad(x_cnhw, ((0, 0), (0, 0), (1, 1), (1, 1)))
    taps = []
    for dy in range(3):
        for dx in range(3):
            taps.append(xp[:, :, pi + dy:pi + dy + 2 * Hp:2,
                               pj + dx:pj + dx + 2 * Wp:2])              # (C,N,Hp,Wp)
    p = jnp.stack(taps, axis=0)                                          # (9,C,N,Hp,Wp)
    return p.reshape(9 * C, N * Hp * Wp)                                 # tap-major, ch-minor


def conv_bn_relu_pool(x_cnhw, w, gamma, beta):
    """One fused cnn block.  x: (Cin, N, H, W) f32 -> (Cout, N, H//2, W//2) f32."""
    Cin, N, H, W = x_cnhw.shape
    Cout = w.shape[0]
    Hp, Wp = H // 2, W // 2
    Mp = N * Hp * Wp                       # pooled spatial positions (lane axis)
    K = 9 * Cin
    Kp = _round_up(K, 8)
    TM = min(512, _round_up(Mp, 128))      # 512-class lane tiles ~ HBM roofline plateau
    Mp_pad = _round_up(Mp, TM)
    num_tiles = Mp_pad // TM

    # torch (Cout, Cin, 3, 3) -> (Cout, 9*Cin) tap-major / channel-minor, padded.
    w_mat = jnp.transpose(w, (0, 2, 3, 1)).reshape(Cout, K)
    w_mat = jnp.pad(w_mat, ((0, 8 - Cout), (0, Kp - K)))
    g = jnp.pad(gamma, (0, 8 - Cout)).reshape(8, 1)
    b = jnp.pad(beta, (0, 8 - Cout)).reshape(8, 1)

    def patches(pi, pj):
        p = _phase_patches(x_cnhw, pi, pj)
        return jnp.pad(p, ((0, Kp - K), (0, Mp_pad - Mp)))   # zero pads: stats-neutral

    p00, p01, p10, p11 = patches(0, 0), patches(0, 1), patches(1, 0), patches(1, 1)

    kernel = functools.partial(_conv_bn_relu_pool_kernel,
                               inv_count=1.0 / float(4 * Mp),            # = 1/(N*H*W)
                               eps=BN_EPS)
    patch_spec = pl.BlockSpec((Kp, TM), lambda p, t: (0, t))
    const_spec = lambda shape: pl.BlockSpec(shape, lambda p, t: (0, 0))

    out = pl.pallas_call(
        kernel,
        grid=(2, num_tiles),
        in_specs=[const_spec((8, Kp)), const_spec((8, 1)), const_spec((8, 1)),
                  patch_spec, patch_spec, patch_spec, patch_spec],
        out_specs=pl.BlockSpec((8, TM), lambda p, t: (0, t)),
        out_shape=jax.ShapeDtypeStruct((8, Mp_pad), jnp.float32),
        scratch_shapes=[pltpu.VMEM((8, 1), jnp.float32),     # per-channel sum
                        pltpu.VMEM((8, 1), jnp.float32)],    # per-channel sum of squares
        compiler_params=pltpu.CompilerParams(
            # Cross-tile BN statistics force sequential ("arbitrary") grid axes; the
            # per-step working set is ~1 MiB so the default scoped VMEM is sufficient
            # on v5e / v6e / v7x without raising vmem_limit_bytes.
            dimension_semantics=("arbitrary", "arbitrary")),
    )(w_mat, g, b, p00, p01, p10, p11)

    return out[:Cout, :Mp].reshape(Cout, N, Hp, Wp)


# ------------------------------ Linear ---------------------------------------
def _linear_kernel(x_ref, w_ref, b_ref, o_ref):
    o_ref[...] = (jnp.dot(x_ref[...], w_ref[...], preferred_element_type=jnp.float32)
                  + b_ref[...])


def linear(x, w_t, b):
    """x: (N, F), w_t: (F, O), b: (O,) -> (N, O). Output lane-padded to 128 internally."""
    N, F = x.shape
    O = w_t.shape[1]
    Op = _round_up(O, 128)                 # lane-dense output, sliced back to O in glue
    Np0 = _round_up(N, 8)
    TN = min(256, Np0)
    Np = _round_up(Np0, TN)

    xp = jnp.pad(x, ((0, Np - N), (0, 0)))
    wp = jnp.pad(w_t, ((0, 0), (0, Op - O)))
    bp = jnp.pad(b, (0, Op - O)).reshape(1, Op)

    out = pl.pallas_call(
        _linear_kernel,
        grid=(Np // TN,),
        in_specs=[pl.BlockSpec((TN, F), lambda i: (i, 0)),
                  pl.BlockSpec((F, Op), lambda i: (0, 0)),
                  pl.BlockSpec((1, Op), lambda i: (0, 0))],
        out_specs=pl.BlockSpec((TN, Op), lambda i: (i, 0)),
        out_shape=jax.ShapeDtypeStruct((Np, Op), jnp.float32),
        compiler_params=pltpu.CompilerParams(dimension_semantics=("parallel",)),
    )(xp, wp, bp)
    return out[:N, :O]


# ------------------------------ network --------------------------------------
def init_params(key):
    ks = jax.random.split(key, 6)
    return dict(
        w1=jax.random.normal(ks[0], (4, 1, 3, 3), jnp.float32) * 0.2,    # Conv2d(1,4,3,p=1)
        b1=jax.random.normal(ks[1], (4,), jnp.float32) * 0.1,            # cancelled by BN (unused)
        g1=jnp.ones((4,), jnp.float32),                                  # BatchNorm2d(4)
        be1=jnp.zeros((4,), jnp.float32),
        w2=jax.random.normal(ks[2], (4, 4, 3, 3), jnp.float32) * 0.2,    # Conv2d(4,4,3,p=1)
        b2=jax.random.normal(ks[3], (4,), jnp.float32) * 0.1,            # cancelled by BN (unused)
        g2=jnp.ones((4,), jnp.float32),
        be2=jnp.zeros((4,), jnp.float32),
        wl=jax.random.normal(ks[4], (10, 4 * 7 * 7), jnp.float32) * 0.05,  # Linear(196, 10)
        bl=jax.random.normal(ks[5], (10,), jnp.float32) * 0.05,
    )


def net_forward(x_nchw, params):
    N = x_nchw.shape[0]
    x = jnp.transpose(x_nchw, (1, 0, 2, 3)).astype(jnp.float32)          # NCHW -> (C,N,H,W)
    y1 = conv_bn_relu_pool(x, params['w1'], params['g1'], params['be1'])   # (4, N, 14, 14)
    y2 = conv_bn_relu_pool(y1, params['w2'], params['g2'], params['be2'])  # (4, N, 7, 7)
    # torch x.view(N, -1) flattens NCHW: (N, C*7*7) channel-major (tiny transpose).
    feat = jnp.transpose(y2, (1, 0, 2, 3)).reshape(N, 4 * 7 * 7)
    return linear(feat, params['wl'].T, params['bl'])


if __name__ == "__main__":
    key = jax.random.PRNGKey(0)
    kx, kp = jax.random.split(key)
    # MNIST-like input implied by Linear(4*7*7, 10): 28x28, 1 channel; small batch of 2.
    x = jax.random.normal(kx, (2, 1, 28, 28), jnp.float32)
    params = init_params(kp)
    out = jax.jit(net_forward)(x, params)
    jax.block_until_ready(out)
    assert out.shape == (2, 10)
    print("KERNEL_OK")
</pallas_src>

<mosaic_0001>
module attributes {stable_mosaic.version = 11 : i64} {
  func.func @_conv_bn_relu_pool_kernel(%arg0: i32, %arg1: i32, %arg2: memref<8x16xf32, #tpu.memory_space<vmem>>, %arg3: memref<8x1xf32, #tpu.memory_space<vmem>>, %arg4: memref<8x1xf32, #tpu.memory_space<vmem>>, %arg5: memref<16x512xf32, #tpu.memory_space<vmem>>, %arg6: memref<16x512xf32, #tpu.memory_space<vmem>>, %arg7: memref<16x512xf32, #tpu.memory_space<vmem>>, %arg8: memref<16x512xf32, #tpu.memory_space<vmem>>, %arg9: memref<8x512xf32, #tpu.memory_space<vmem>>, %arg10: memref<8x1xf32, #tpu.memory_space<vmem>>, %arg11: memref<8x1xf32, #tpu.memory_space<vmem>>) attributes {dimension_semantics = [#tpu.dimension_semantics<arbitrary>, #tpu.dimension_semantics<arbitrary>], iteration_bounds = array<i64: 2, 1>, scalar_prefetch = 0 : i64, scratch_operands = 2 : i64, tpu.core_type = #tpu.core_type<tc>, window_params = [{pipeline_mode = #tpu.pipeline_mode<synchronous>, transform_indices = @transform_0, window_bounds = array<i64: 8, 16>}, {pipeline_mode = #tpu.pipeline_mode<synchronous>, transform_indices = @transform_1, window_bounds = array<i64: 8, 1>}, {pipeline_mode = #tpu.pipeline_mode<synchronous>, transform_indices = @transform_2, window_bounds = array<i64: 8, 1>}, {transform_indices = @transform_3, window_bounds = array<i64: 16, 512>}, {transform_indices = @transform_4, window_bounds = array<i64: 16, 512>}, {transform_indices = @transform_5, window_bounds = array<i64: 16, 512>}, {transform_indices = @transform_6, window_bounds = array<i64: 16, 512>}, {transform_indices = @transform_7, window_bounds = array<i64: 8, 512>}]} {
    %c0_i32 = arith.constant 0 : i32
    %0 = arith.cmpi eq, %arg0, %c0_i32 : i32
    %c0_i32_0 = arith.constant 0 : i32
    %1 = arith.cmpi eq, %arg1, %c0_i32_0 : i32
    %2 = arith.andi %0, %1 : i1
    %3 = arith.extui %2 : i1 to i32
    %c0_i32_1 = arith.constant 0 : i32
    %4 = arith.cmpi ne, %3, %c0_i32_1 : i32
    scf.if %4 {
      %cst_17 = arith.constant 0.000000e+00 : f32
      %20 = vector.broadcast %cst_17 : f32 to vector<8x1xf32>
      %c0_18 = arith.constant 0 : index
      %c0_19 = arith.constant 0 : index
      %21 = vector.load %arg10[%c0_18, %c0_19] : memref<8x1xf32, #tpu.memory_space<vmem>>, vector<8x1xf32>
      tpu.vector_store %arg10[%c0_18, %c0_19], %20 {strides = array<i32>} : memref<8x1xf32, #tpu.memory_space<vmem>>, vector<8x1xf32>,
      %cst_20 = arith.constant 0.000000e+00 : f32
      %22 = vector.broadcast %cst_20 : f32 to vector<8x1xf32>
      %c0_21 = arith.constant 0 : index
      %c0_22 = arith.constant 0 : index
      %23 = vector.load %arg11[%c0_21, %c0_22] : memref<8x1xf32, #tpu.memory_space<vmem>>, vector<8x1xf32>
      tpu.vector_store %arg11[%c0_21, %c0_22], %22 {strides = array<i32>} : memref<8x1xf32, #tpu.memory_space<vmem>>, vector<8x1xf32>,
    } else {
    }
    %c0 = arith.constant 0 : index
    %c0_2 = arith.constant 0 : index
    %5 = vector.load %arg2[%c0, %c0_2] : memref<8x16xf32, #tpu.memory_space<vmem>>, vector<8x16xf32>
    %c0_3 = arith.constant 0 : index
    %c0_4 = arith.constant 0 : index
    %6 = vector.load %arg5[%c0_3, %c0_4] : memref<16x512xf32, #tpu.memory_space<vmem>>, vector<16x512xf32>
    %cst = arith.constant dense<0.000000e+00> : vector<8x512xf32>
    %7 = tpu.matmul %5, %6, %cst {dimension_numbers = #tpu.dot_dimension_numbers<[1], [0], [0], [1], [0, 0, 1, 1], [], []>} : vector<8x16xf32>, vector<16x512xf32>, vector<8x512xf32> -> vector<8x512xf32>
    %c0_5 = arith.constant 0 : index
    %c0_6 = arith.constant 0 : index
    %8 = vector.load %arg6[%c0_5, %c0_6] : memref<16x512xf32, #tpu.memory_space<vmem>>, vector<16x512xf32>
    %cst_7 = arith.constant dense<0.000000e+00> : vector<8x512xf32>
    %9 = tpu.matmul %5, %8, %cst_7 {dimension_numbers = #tpu.dot_dimension_numbers<[1], [0], [0], [1], [0, 0, 1, 1], [], []>} : vector<8x16xf32>, vector<16x512xf32>, vector<8x512xf32> -> vector<8x512xf32>
    %c0_8 = arith.constant 0 : index
    %c0_9 = arith.constant 0 : index
    %10 = vector.load %arg7[%c0_8, %c0_9] : memref<16x512xf32, #tpu.memory_space<vmem>>, vector<16x512xf32>
    %cst_10 = arith.constant dense<0.000000e+00> : vector<8x512xf32>
    %11 = tpu.matmul %5, %10, %cst_10 {dimension_numbers = #tpu.dot_dimension_numbers<[1], [0], [0], [1], [0, 0, 1, 1], [], []>} : vector<8x16xf32>, vector<16x512xf32>, vector<8x512xf32> -> vector<8x512xf32>
    %c0_11 = arith.constant 0 : index
    %c0_12 = arith.constant 0 : index
    %12 = vector.load %arg8[%c0_11, %c0_12] : memref<16x512xf32, #tpu.memory_space<vmem>>, vector<16x512xf32>
    %cst_13 = arith.constant dense<0.000000e+00> : vector<8x512xf32>
    %13 = tpu.matmul %5, %12, %cst_13 {dimension_numbers = #tpu.dot_dimension_numbers<[1], [0], [0], [1], [0, 0, 1, 1], [], []>} : vector<8x16xf32>, vector<16x512xf32>, vector<8x512xf32> -> vector<8x512xf32>
    %c0_i32_14 = arith.constant 0 : i32
    %14 = arith.cmpi eq, %arg0, %c0_i32_14 : i32
    %15 = arith.extui %14 : i1 to i32
    %c0_i32_15 = arith.constant 0 : i32
    %16 = arith.cmpi ne, %15, %c0_i32_15 : i32
    scf.if %16 {
      %20 = arith.addf %7, %9 : vector<8x512xf32>
      %21 = arith.addf %20, %11 : vector<8x512xf32>
      %22 = arith.addf %21, %13 : vector<8x512xf32>
      %23 = arith.mulf %7, %7 : vector<8x512xf32>
      %24 = arith.mulf %9, %9 : vector<8x512xf32>
      %25 = arith.addf %23, %24 : vector<8x512xf32>
      %26 = arith.mulf %11, %11 : vector<8x512xf32>
      %27 = arith.addf %25, %26 : vector<8x512xf32>
      %28 = arith.mulf %13, %13 : vector<8x512xf32>
      %29 = arith.addf %27, %28 : vector<8x512xf32>
      %c0_17 = arith.constant 0 : index
      %c0_18 = arith.constant 0 : index
      %30 = vector.load %arg10[%c0_17, %c0_18] : memref<8x1xf32, #tpu.memory_space<vmem>>, vector<8x1xf32>
      %cst_19 = arith.constant dense<0.000000e+00> : vector<8xf32>
      %31 = vector.multi_reduction <add>, %22, %cst_19 [1] : vector<8x512xf32> to vector<8xf32>
      %32 = vector.shape_cast %31 : vector<8xf32> to vector<8x1xf32>
      %33 = arith.addf %30, %32 : vector<8x1xf32>
      %c0_20 = arith.constant 0 : index
      %c0_21 = arith.constant 0 : index
      %34 = vector.load %arg10[%c0_20, %c0_21] : memref<8x1xf32, #tpu.memory_space<vmem>>, vector<8x1xf32>
      tpu.vector_store %arg10[%c0_20, %c0_21], %33 {strides = array<i32>} : memref<8x1xf32, #tpu.memory_space<vmem>>, vector<8x1xf32>,
      %c0_22 = arith.constant 0 : index
      %c0_23 = arith.constant 0 : index
      %35 = vector.load %arg11[%c0_22, %c0_23] : memref<8x1xf32, #tpu.memory_space<vmem>>, vector<8x1xf32>
      %cst_24 = arith.constant dense<0.000000e+00> : vector<8xf32>
      %36 = vector.multi_reduction <add>, %29, %cst_24 [1] : vector<8x512xf32> to vector<8xf32>
      %37 = vector.shape_cast %36 : vector<8xf32> to vector<8x1xf32>
      %38 = arith.addf %35, %37 : vector<8x1xf32>
      %c0_25 = arith.constant 0 : index
      %c0_26 = arith.constant 0 : index
      %39 = vector.load %arg11[%c0_25, %c0_26] : memref<8x1xf32, #tpu.memory_space<vmem>>, vector<8x1xf32>
      tpu.vector_store %arg11[%c0_25, %c0_26], %38 {strides = array<i32>} : memref<8x1xf32, #tpu.memory_space<vmem>>, vector<8x1xf32>,
    } else {
    }
    %c1_i32 = arith.constant 1 : i32
    %17 = arith.cmpi eq, %arg0, %c1_i32 : i32
    %18 = arith.extui %17 : i1 to i32
    %c0_i32_16 = arith.constant 0 : i32
    %19 = arith.cmpi ne, %18, %c0_i32_16 : i32
    scf.if %19 {
      %c0_17 = arith.constant 0 : index
      %c0_18 = arith.constant 0 : index
      %20 = vector.load %arg10[%c0_17, %c0_18] : memref<8x1xf32, #tpu.memory_space<vmem>>, vector<8x1xf32>
      %cst_19 = arith.constant 6.37755089E-4 : f32
      %21 = vector.broadcast %cst_19 : f32 to vector<8x1xf32>
      %22 = arith.mulf %20, %21 : vector<8x1xf32>
      %c0_20 = arith.constant 0 : index
      %c0_21 = arith.constant 0 : index
      %23 = vector.load %arg11[%c0_20, %c0_21] : memref<8x1xf32, #tpu.memory_space<vmem>>, vector<8x1xf32>
      %cst_22 = arith.constant 6.37755089E-4 : f32
      %24 = vector.broadcast %cst_22 : f32 to vector<8x1xf32>
      %25 = arith.mulf %23, %24 : vector<8x1xf32>
      %26 = arith.mulf %22, %22 : vector<8x1xf32>
      %27 = arith.subf %25, %26 : vector<8x1xf32>
      %cst_23 = arith.constant 0.000000e+00 : f32
      %28 = vector.broadcast %cst_23 : f32 to vector<8x1xf32>
      %29 = arith.maximumf %27, %28 : vector<8x1xf32>
      %c0_24 = arith.constant 0 : index
      %c0_25 = arith.constant 0 : index
      %30 = vector.load %arg3[%c0_24, %c0_25] : memref<8x1xf32, #tpu.memory_space<vmem>>, vector<8x1xf32>
      %cst_26 = arith.constant 9.99999974E-6 : f32
      %31 = vector.broadcast %cst_26 : f32 to vector<8x1xf32>
      %32 = arith.addf %29, %31 : vector<8x1xf32>
      %33 = math.rsqrt %32 : vector<8x1xf32>
      %34 = arith.mulf %30, %33 : vector<8x1xf32>
      %c0_27 = arith.constant 0 : index
      %c0_28 = arith.constant 0 : index
      %35 = vector.load %arg4[%c0_27, %c0_28] : memref<8x1xf32, #tpu.memory_space<vmem>>, vector<8x1xf32>
      %36 = arith.mulf %22, %34 : vector<8x1xf32>
      %37 = arith.subf %35, %36 : vector<8x1xf32>
      %38 = vector.broadcast %34 : vector<8x1xf32> to vector<8x512xf32>
      %39 = arith.mulf %7, %38 : vector<8x512xf32>
      %40 = vector.broadcast %34 : vector<8x1xf32> to vector<8x512xf32>
      %41 = arith.mulf %9, %40 : vector<8x512xf32>
      %42 = arith.maximumf %39, %41 : vector<8x512xf32>
      %43 = vector.broadcast %34 : vector<8x1xf32> to vector<8x512xf32>
      %44 = arith.mulf %11, %43 : vector<8x512xf32>
      %45 = vector.broadcast %34 : vector<8x1xf32> to vector<8x512xf32>
      %46 = arith.mulf %13, %45 : vector<8x512xf32>
      %47 = arith.maximumf %44, %46 : vector<8x512xf32>
      %48 = arith.maximumf %42, %47 : vector<8x512xf32>
      %49 = vector.broadcast %37 : vector<8x1xf32> to vector<8x512xf32>
      %50 = arith.addf %48, %49 : vector<8x512xf32>
      %cst_29 = arith.constant 0.000000e+00 : f32
      %51 = vector.broadcast %cst_29 : f32 to vector<8x512xf32>
      %52 = arith.maximumf %50, %51 : vector<8x512xf32>
      %c0_30 = arith.constant 0 : index
      %c0_31 = arith.constant 0 : index
      %53 = vector.load %arg9[%c0_30, %c0_31] : memref<8x512xf32, #tpu.memory_space<vmem>>, vector<8x512xf32>
      tpu.vector_store %arg9[%c0_30, %c0_31], %52 {strides = array<i32>} : memref<8x512xf32, #tpu.memory_space<vmem>>, vector<8x512xf32>,
    } else {
    }
    return
  }
  func.func @transform_0(%arg0: i32, %arg1: i32) -> (i32, i32) {
    %c0_i32 = arith.constant 0 : i32
    %c0_i32_0 = arith.constant 0 : i32
    %c0_i32_1 = arith.constant 0 : i32
    return %c0_i32, %c0_i32_0 : i32, i32
  }
  func.func @transform_1(%arg0: i32, %arg1: i32) -> (i32, i32) {
    %c0_i32 = arith.constant 0 : i32
    %c0_i32_0 = arith.constant 0 : i32
    %c0_i32_1 = arith.constant 0 : i32
    return %c0_i32, %c0_i32_0 : i32, i32
  }
  func.func @transform_2(%arg0: i32, %arg1: i32) -> (i32, i32) {
    %c0_i32 = arith.constant 0 : i32
    %c0_i32_0 = arith.constant 0 : i32
    %c0_i32_1 = arith.constant 0 : i32
    return %c0_i32, %c0_i32_0 : i32, i32
  }
  func.func @transform_3(%arg0: i32, %arg1: i32) -> (i32, i32) {
    %c0_i32 = arith.constant 0 : i32
    %c0_i32_0 = arith.constant 0 : i32
    return %c0_i32, %arg1 : i32, i32
  }
  func.func @transform_4(%arg0: i32, %arg1: i32) -> (i32, i32) {
    %c0_i32 = arith.constant 0 : i32
    %c0_i32_0 = arith.constant 0 : i32
    return %c0_i32, %arg1 : i32, i32
  }
  func.func @transform_5(%arg0: i32, %arg1: i32) -> (i32, i32) {
    %c0_i32 = arith.constant 0 : i32
    %c0_i32_0 = arith.constant 0 : i32
    return %c0_i32, %arg1 : i32, i32
  }
  func.func @transform_6(%arg0: i32, %arg1: i32) -> (i32, i32) {
    %c0_i32 = arith.constant 0 : i32
    %c0_i32_0 = arith.constant 0 : i32
    return %c0_i32, %arg1 : i32, i32
  }
  func.func @transform_7(%arg0: i32, %arg1: i32) -> (i32, i32) {
    %c0_i32 = arith.constant 0 : i32
    %c0_i32_0 = arith.constant 0 : i32
    return %c0_i32, %arg1 : i32, i32
  }
}

module attributes {stable_mosaic.version = 11 : i64} {
  func.func @_conv_bn_relu_pool_kernel(%arg0: i32, %arg1: i32, %arg2: memref<8x40xf32, #tpu.memory_space<vmem>>, %arg3: memref<8x1xf32, #tpu.memory_space<vmem>>, %arg4: memref<8x1xf32, #tpu.memory_space<vmem>>, %arg5: memref<40x128xf32, #tpu.memory_space<vmem>>, %arg6: memref<40x128xf32, #tpu.memory_space<vmem>>, %arg7: memref<40x128xf32, #tpu.memory_space<vmem>>, %arg8: memref<40x128xf32, #tpu.memory_space<vmem>>, %arg9: memref<8x128xf32, #tpu.memory_space<vmem>>, %arg10: memref<8x1xf32, #tpu.memory_space<vmem>>, %arg11: memref<8x1xf32, #tpu.memory_space<vmem>>) attributes {dimension_semantics = [#tpu.dimension_semantics<arbitrary>, #tpu.dimension_semantics<arbitrary>], iteration_bounds = array<i64: 2, 1>, scalar_prefetch = 0 : i64, scratch_operands = 2 : i64, tpu.core_type = #tpu.core_type<tc>, window_params = [{pipeline_mode = #tpu.pipeline_mode<synchronous>, transform_indices = @transform_0, window_bounds = array<i64: 8, 40>}, {pipeline_mode = #tpu.pipeline_mode<synchronous>, transform_indices = @transform_1, window_bounds = array<i64: 8, 1>}, {pipeline_mode = #tpu.pipeline_mode<synchronous>, transform_indices = @transform_2, window_bounds = array<i64: 8, 1>}, {transform_indices = @transform_3, window_bounds = array<i64: 40, 128>}, {transform_indices = @transform_4, window_bounds = array<i64: 40, 128>}, {transform_indices = @transform_5, window_bounds = array<i64: 40, 128>}, {transform_indices = @transform_6, window_bounds = array<i64: 40, 128>}, {transform_indices = @transform_7, window_bounds = array<i64: 8, 128>}]} {
    %c0_i32 = arith.constant 0 : i32
    %0 = arith.cmpi eq, %arg0, %c0_i32 : i32
    %c0_i32_0 = arith.constant 0 : i32
    %1 = arith.cmpi eq, %arg1, %c0_i32_0 : i32
    %2 = arith.andi %0, %1 : i1
    %3 = arith.extui %2 : i1 to i32
    %c0_i32_1 = arith.constant 0 : i32
    %4 = arith.cmpi ne, %3, %c0_i32_1 : i32
    scf.if %4 {
      %cst_17 = arith.constant 0.000000e+00 : f32
      %20 = vector.broadcast %cst_17 : f32 to vector<8x1xf32>
      %c0_18 = arith.constant 0 : index
      %c0_19 = arith.constant 0 : index
      %21 = vector.load %arg10[%c0_18, %c0_19] : memref<8x1xf32, #tpu.memory_space<vmem>>, vector<8x1xf32>
      tpu.vector_store %arg10[%c0_18, %c0_19], %20 {strides = array<i32>} : memref<8x1xf32, #tpu.memory_space<vmem>>, vector<8x1xf32>,
      %cst_20 = arith.constant 0.000000e+00 : f32
      %22 = vector.broadcast %cst_20 : f32 to vector<8x1xf32>
      %c0_21 = arith.constant 0 : index
      %c0_22 = arith.constant 0 : index
      %23 = vector.load %arg11[%c0_21, %c0_22] : memref<8x1xf32, #tpu.memory_space<vmem>>, vector<8x1xf32>
      tpu.vector_store %arg11[%c0_21, %c0_22], %22 {strides = array<i32>} : memref<8x1xf32, #tpu.memory_space<vmem>>, vector<8x1xf32>,
    } else {
    }
    %c0 = arith.constant 0 : index
    %c0_2 = arith.constant 0 : index
    %5 = vector.load %arg2[%c0, %c0_2] : memref<8x40xf32, #tpu.memory_space<vmem>>, vector<8x40xf32>
    %c0_3 = arith.constant 0 : index
    %c0_4 = arith.constant 0 : index
    %6 = vector.load %arg5[%c0_3, %c0_4] : memref<40x128xf32, #tpu.memory_space<vmem>>, vector<40x128xf32>
    %cst = arith.constant dense<0.000000e+00> : vector<8x128xf32>
    %7 = tpu.matmul %5, %6, %cst {dimension_numbers = #tpu.dot_dimension_numbers<[1], [0], [0], [1], [0, 0, 1, 1], [], []>} : vector<8x40xf32>, vector<40x128xf32>, vector<8x128xf32> -> vector<8x128xf32>
    %c0_5 = arith.constant 0 : index
    %c0_6 = arith.constant 0 : index
    %8 = vector.load %arg6[%c0_5, %c0_6] : memref<40x128xf32, #tpu.memory_space<vmem>>, vector<40x128xf32>
    %cst_7 = arith.constant dense<0.000000e+00> : vector<8x128xf32>
    %9 = tpu.matmul %5, %8, %cst_7 {dimension_numbers = #tpu.dot_dimension_numbers<[1], [0], [0], [1], [0, 0, 1, 1], [], []>} : vector<8x40xf32>, vector<40x128xf32>, vector<8x128xf32> -> vector<8x128xf32>
    %c0_8 = arith.constant 0 : index
    %c0_9 = arith.constant 0 : index
    %10 = vector.load %arg7[%c0_8, %c0_9] : memref<40x128xf32, #tpu.memory_space<vmem>>, vector<40x128xf32>
    %cst_10 = arith.constant dense<0.000000e+00> : vector<8x128xf32>
    %11 = tpu.matmul %5, %10, %cst_10 {dimension_numbers = #tpu.dot_dimension_numbers<[1], [0], [0], [1], [0, 0, 1, 1], [], []>} : vector<8x40xf32>, vector<40x128xf32>, vector<8x128xf32> -> vector<8x128xf32>
    %c0_11 = arith.constant 0 : index
    %c0_12 = arith.constant 0 : index
    %12 = vector.load %arg8[%c0_11, %c0_12] : memref<40x128xf32, #tpu.memory_space<vmem>>, vector<40x128xf32>
    %cst_13 = arith.constant dense<0.000000e+00> : vector<8x128xf32>
    %13 = tpu.matmul %5, %12, %cst_13 {dimension_numbers = #tpu.dot_dimension_numbers<[1], [0], [0], [1], [0, 0, 1, 1], [], []>} : vector<8x40xf32>, vector<40x128xf32>, vector<8x128xf32> -> vector<8x128xf32>
    %c0_i32_14 = arith.constant 0 : i32
    %14 = arith.cmpi eq, %arg0, %c0_i32_14 : i32
    %15 = arith.extui %14 : i1 to i32
    %c0_i32_15 = arith.constant 0 : i32
    %16 = arith.cmpi ne, %15, %c0_i32_15 : i32
    scf.if %16 {
      %20 = arith.addf %7, %9 : vector<8x128xf32>
      %21 = arith.addf %20, %11 : vector<8x128xf32>
      %22 = arith.addf %21, %13 : vector<8x128xf32>
      %23 = arith.mulf %7, %7 : vector<8x128xf32>
      %24 = arith.mulf %9, %9 : vector<8x128xf32>
      %25 = arith.addf %23, %24 : vector<8x128xf32>
      %26 = arith.mulf %11, %11 : vector<8x128xf32>
      %27 = arith.addf %25, %26 : vector<8x128xf32>
      %28 = arith.mulf %13, %13 : vector<8x128xf32>
      %29 = arith.addf %27, %28 : vector<8x128xf32>
      %c0_17 = arith.constant 0 : index
      %c0_18 = arith.constant 0 : index
      %30 = vector.load %arg10[%c0_17, %c0_18] : memref<8x1xf32, #tpu.memory_space<vmem>>, vector<8x1xf32>
      %cst_19 = arith.constant dense<0.000000e+00> : vector<8xf32>
      %31 = vector.multi_reduction <add>, %22, %cst_19 [1] : vector<8x128xf32> to vector<8xf32>
      %32 = vector.shape_cast %31 : vector<8xf32> to vector<8x1xf32>
      %33 = arith.addf %30, %32 : vector<8x1xf32>
      %c0_20 = arith.constant 0 : index
      %c0_21 = arith.constant 0 : index
      %34 = vector.load %arg10[%c0_20, %c0_21] : memref<8x1xf32, #tpu.memory_space<vmem>>, vector<8x1xf32>
      tpu.vector_store %arg10[%c0_20, %c0_21], %33 {strides = array<i32>} : memref<8x1xf32, #tpu.memory_space<vmem>>, vector<8x1xf32>,
      %c0_22 = arith.constant 0 : index
      %c0_23 = arith.constant 0 : index
      %35 = vector.load %arg11[%c0_22, %c0_23] : memref<8x1xf32, #tpu.memory_space<vmem>>, vector<8x1xf32>
      %cst_24 = arith.constant dense<0.000000e+00> : vector<8xf32>
      %36 = vector.multi_reduction <add>, %29, %cst_24 [1] : vector<8x128xf32> to vector<8xf32>
      %37 = vector.shape_cast %36 : vector<8xf32> to vector<8x1xf32>
      %38 = arith.addf %35, %37 : vector<8x1xf32>
      %c0_25 = arith.constant 0 : index
      %c0_26 = arith.constant 0 : index
      %39 = vector.load %arg11[%c0_25, %c0_26] : memref<8x1xf32, #tpu.memory_space<vmem>>, vector<8x1xf32>
      tpu.vector_store %arg11[%c0_25, %c0_26], %38 {strides = array<i32>} : memref<8x1xf32, #tpu.memory_space<vmem>>, vector<8x1xf32>,
    } else {
    }
    %c1_i32 = arith.constant 1 : i32
    %17 = arith.cmpi eq, %arg0, %c1_i32 : i32
    %18 = arith.extui %17 : i1 to i32
    %c0_i32_16 = arith.constant 0 : i32
    %19 = arith.cmpi ne, %18, %c0_i32_16 : i32
    scf.if %19 {
      %c0_17 = arith.constant 0 : index
      %c0_18 = arith.constant 0 : index
      %20 = vector.load %arg10[%c0_17, %c0_18] : memref<8x1xf32, #tpu.memory_space<vmem>>, vector<8x1xf32>
      %cst_19 = arith.constant 0.00255102036 : f32
      %21 = vector.broadcast %cst_19 : f32 to vector<8x1xf32>
      %22 = arith.mulf %20, %21 : vector<8x1xf32>
      %c0_20 = arith.constant 0 : index
      %c0_21 = arith.constant 0 : index
      %23 = vector.load %arg11[%c0_20, %c0_21] : memref<8x1xf32, #tpu.memory_space<vmem>>, vector<8x1xf32>
      %cst_22 = arith.constant 0.00255102036 : f32
      %24 = vector.broadcast %cst_22 : f32 to vector<8x1xf32>
      %25 = arith.mulf %23, %24 : vector<8x1xf32>
      %26 = arith.mulf %22, %22 : vector<8x1xf32>
      %27 = arith.subf %25, %26 : vector<8x1xf32>
      %cst_23 = arith.constant 0.000000e+00 : f32
      %28 = vector.broadcast %cst_23 : f32 to vector<8x1xf32>
      %29 = arith.maximumf %27, %28 : vector<8x1xf32>
      %c0_24 = arith.constant 0 : index
      %c0_25 = arith.constant 0 : index
      %30 = vector.load %arg3[%c0_24, %c0_25] : memref<8x1xf32, #tpu.memory_space<vmem>>, vector<8x1xf32>
      %cst_26 = arith.constant 9.99999974E-6 : f32
      %31 = vector.broadcast %cst_26 : f32 to vector<8x1xf32>
      %32 = arith.addf %29, %31 : vector<8x1xf32>
      %33 = math.rsqrt %32 : vector<8x1xf32>
      %34 = arith.mulf %30, %33 : vector<8x1xf32>
      %c0_27 = arith.constant 0 : index
      %c0_28 = arith.constant 0 : index
      %35 = vector.load %arg4[%c0_27, %c0_28] : memref<8x1xf32, #tpu.memory_space<vmem>>, vector<8x1xf32>
      %36 = arith.mulf %22, %34 : vector<8x1xf32>
      %37 = arith.subf %35, %36 : vector<8x1xf32>
      %38 = vector.broadcast %34 : vector<8x1xf32> to vector<8x128xf32>
      %39 = arith.mulf %7, %38 : vector<8x128xf32>
      %40 = vector.broadcast %34 : vector<8x1xf32> to vector<8x128xf32>
      %41 = arith.mulf %9, %40 : vector<8x128xf32>
      %42 = arith.maximumf %39, %41 : vector<8x128xf32>
      %43 = vector.broadcast %34 : vector<8x1xf32> to vector<8x128xf32>
      %44 = arith.mulf %11, %43 : vector<8x128xf32>
      %45 = vector.broadcast %34 : vector<8x1xf32> to vector<8x128xf32>
      %46 = arith.mulf %13, %45 : vector<8x128xf32>
      %47 = arith.maximumf %44, %46 : vector<8x128xf32>
      %48 = arith.maximumf %42, %47 : vector<8x128xf32>
      %49 = vector.broadcast %37 : vector<8x1xf32> to vector<8x128xf32>
      %50 = arith.addf %48, %49 : vector<8x128xf32>
      %cst_29 = arith.constant 0.000000e+00 : f32
      %51 = vector.broadcast %cst_29 : f32 to vector<8x128xf32>
      %52 = arith.maximumf %50, %51 : vector<8x128xf32>
      %c0_30 = arith.constant 0 : index
      %c0_31 = arith.constant 0 : index
      %53 = vector.load %arg9[%c0_30, %c0_31] : memref<8x128xf32, #tpu.memory_space<vmem>>, vector<8x128xf32>
      tpu.vector_store %arg9[%c0_30, %c0_31], %52 {strides = array<i32>} : memref<8x128xf32, #tpu.memory_space<vmem>>, vector<8x128xf32>,
    } else {
    }
    return
  }
  func.func @transform_0(%arg0: i32, %arg1: i32) -> (i32, i32) {
    %c0_i32 = arith.constant 0 : i32
    %c0_i32_0 = arith.constant 0 : i32
    %c0_i32_1 = arith.constant 0 : i32
    return %c0_i32, %c0_i32_0 : i32, i32
  }
  func.func @transform_1(%arg0: i32, %arg1: i32) -> (i32, i32) {
    %c0_i32 = arith.constant 0 : i32
    %c0_i32_0 = arith.constant 0 : i32
    %c0_i32_1 = arith.constant 0 : i32
    return %c0_i32, %c0_i32_0 : i32, i32
  }
  func.func @transform_2(%arg0: i32, %arg1: i32) -> (i32, i32) {
    %c0_i32 = arith.constant 0 : i32
    %c0_i32_0 = arith.constant 0 : i32
    %c0_i32_1 = arith.constant 0 : i32
    return %c0_i32, %c0_i32_0 : i32, i32
  }
  func.func @transform_3(%arg0: i32, %arg1: i32) -> (i32, i32) {
    %c0_i32 = arith.constant 0 : i32
    %c0_i32_0 = arith.constant 0 : i32
    return %c0_i32, %arg1 : i32, i32
  }
  func.func @transform_4(%arg0: i32, %arg1: i32) -> (i32, i32) {
    %c0_i32 = arith.constant 0 : i32
    %c0_i32_0 = arith.constant 0 : i32
    return %c0_i32, %arg1 : i32, i32
  }
  func.func @transform_5(%arg0: i32, %arg1: i32) -> (i32, i32) {
    %c0_i32 = arith.constant 0 : i32
    %c0_i32_0 = arith.constant 0 : i32
    return %c0_i32, %arg1 : i32, i32
  }
  func.func @transform_6(%arg0: i32, %arg1: i32) -> (i32, i32) {
    %c0_i32 = arith.constant 0 : i32
    %c0_i32_0 = arith.constant 0 : i32
    return %c0_i32, %arg1 : i32, i32
  }
  func.func @transform_7(%arg0: i32, %arg1: i32) -> (i32, i32) {
    %c0_i32 = arith.constant 0 : i32
    %c0_i32_0 = arith.constant 0 : i32
    return %c0_i32, %arg1 : i32, i32
  }
}

module attributes {stable_mosaic.version = 11 : i64} {
  func.func @_linear_kernel(%arg0: i32, %arg1: memref<8x196xf32, #tpu.memory_space<vmem>>, %arg2: memref<196x128xf32, #tpu.memory_space<vmem>>, %arg3: memref<1x128xf32, #tpu.memory_space<vmem>>, %arg4: memref<8x128xf32, #tpu.memory_space<vmem>>) attributes {dimension_semantics = [#tpu.dimension_semantics<parallel>], iteration_bounds = array<i64: 1>, scalar_prefetch = 0 : i64, scratch_operands = 0 : i64, tpu.core_type = #tpu.core_type<tc>, window_params = [{transform_indices = @transform_0, window_bounds = array<i64: 8, 196>}, {pipeline_mode = #tpu.pipeline_mode<synchronous>, transform_indices = @transform_1, window_bounds = array<i64: 196, 128>}, {pipeline_mode = #tpu.pipeline_mode<synchronous>, transform_indices = @transform_2, window_bounds = array<i64: 1, 128>}, {transform_indices = @transform_3, window_bounds = array<i64: 8, 128>}]} {
    %c0 = arith.constant 0 : index
    %c0_0 = arith.constant 0 : index
    %0 = vector.load %arg1[%c0, %c0_0] : memref<8x196xf32, #tpu.memory_space<vmem>>, vector<8x196xf32>
    %c0_1 = arith.constant 0 : index
    %c0_2 = arith.constant 0 : index
    %1 = vector.load %arg2[%c0_1, %c0_2] : memref<196x128xf32, #tpu.memory_space<vmem>>, vector<196x128xf32>
    %cst = arith.constant dense<0.000000e+00> : vector<8x128xf32>
    %2 = tpu.matmul %0, %1, %cst {dimension_numbers = #tpu.dot_dimension_numbers<[1], [0], [0], [1], [0, 0, 1, 1], [], []>} : vector<8x196xf32>, vector<196x128xf32>, vector<8x128xf32> -> vector<8x128xf32>
    %c0_3 = arith.constant 0 : index
    %c0_4 = arith.constant 0 : index
    %3 = vector.load %arg3[%c0_3, %c0_4] : memref<1x128xf32, #tpu.memory_space<vmem>>, vector<1x128xf32>
    %4 = vector.broadcast %3 : vector<1x128xf32> to vector<8x128xf32>
    %5 = arith.addf %2, %4 : vector<8x128xf32>
    %c0_5 = arith.constant 0 : index
    %c0_6 = arith.constant 0 : index
    %6 = vector.load %arg4[%c0_5, %c0_6] : memref<8x128xf32, #tpu.memory_space<vmem>>, vector<8x128xf32>
    tpu.vector_store %arg4[%c0_5, %c0_6], %5 {strides = array<i32>} : memref<8x128xf32, #tpu.memory_space<vmem>>, vector<8x128xf32>,
    return
  }
  func.func @transform_0(%arg0: i32) -> (i32, i32) {
    %c0_i32 = arith.constant 0 : i32
    %c0_i32_0 = arith.constant 0 : i32
    return %arg0, %c0_i32 : i32, i32
  }
  func.func @transform_1(%arg0: i32) -> (i32, i32) {
    %c0_i32 = arith.constant 0 : i32
    %c0_i32_0 = arith.constant 0 : i32
    %c0_i32_1 = arith.constant 0 : i32
    return %c0_i32, %c0_i32_0 : i32, i32
  }
  func.func @transform_2(%arg0: i32) -> (i32, i32) {
    %c0_i32 = arith.constant 0 : i32
    %c0_i32_0 = arith.constant 0 : i32
    %c0_i32_1 = arith.constant 0 : i32
    return %c0_i32, %c0_i32_0 : i32, i32
  }
  func.func @transform_3(%arg0: i32) -> (i32, i32) {
    %c0_i32 = arith.constant 0 : i32
    %c0_i32_0 = arith.constant 0 : i32
    return %arg0, %c0_i32 : i32, i32
  }
}

</mosaic_0001>

<llo_original>
// kernel: net_forward.3
$region0: #{net_forward.3}
  #allocation0 [shape = 'u32[]', space=smem, size = 0x4, offset = 0x4, fixed_abs, tag = 'smem constant byte address 0x4 - core index']
  #allocation1 [shape = 'u32[72,128]{1,0:T(1,128)}', space=vmem, size = 0x9000, scoped, tag = 'internal scratch']
  #allocation2 [shape = 'f32[8,1]{1,0:T(8,128)}', space=vmem, size = 0x1000, scoped, tag = 'scratch operand']
  #allocation3 [shape = 'f32[8,1]{1,0:T(8,128)}', space=vmem, size = 0x1000, scoped, tag = 'scratch operand']
  %s0 = inlined_call_operand.vmem [shape: f32[8,16], index: 0, kind: input, shape index: {}]
  %s1 = inlined_call_operand.vmem [shape: f32[8,1], index: 1, kind: input, shape index: {}]
  %s2 = inlined_call_operand.vmem [shape: f32[8,1], index: 2, kind: input, shape index: {}]
  %s3 = inlined_call_operand.vmem [shape: f32[16,512], index: 3, kind: input, shape index: {}]
  %s4 = inlined_call_operand.vmem [shape: f32[16,512], index: 4, kind: input, shape index: {}]
  %s5 = inlined_call_operand.vmem [shape: f32[16,512], index: 5, kind: input, shape index: {}]
  %s6 = inlined_call_operand.vmem [shape: f32[16,512], index: 6, kind: input, shape index: {}]
  %s7 = inlined_call_operand.vmem [shape: f32[8,512], index: 7, kind: output, shape index: {}]
  %s8 = sld [smem:[#allocation0]]
  $region73: #{net_forward.3} parent=0
    _
  %s10 = ssub.s32 1, %s8
  %s11 = scalar_select 0, %s10, %s8
  loop: start=0, step=1, limit=4
  $region2: #{net_forward.3} parent=0 // loop_pre_header
    _
  $region3: #{net_forward.3} parent=0 // loop_header
    %s13 = sphi 0, %s17
    %p14 = scmp.ge.s32.totalorder %s13, 4
    %s20 = sphi 0, %s32
    %s21 = sphi 0, %s28
    %s22 = sphi 0, %s20
    %s23 = sphi 0, %s21
    %s24 = sphi 0, %s22
    %s25 = sphi 0, %s23
    %s33 = sphi 0, %s33
    %s35 = sphi 0, %s33
    %s36 = sphi 0, %s35
    %s50 = sphi 0, %s36
    %s54 = sphi 0, %s54
    %s56 = sphi 0, %s54
    %s57 = sphi 0, %s56
    %s71 = sphi 0, %s57
    %s75 = sphi 0, %s75
    %s77 = sphi 0, %s75
    %s78 = sphi 0, %s77
    %s92 = sphi 0, %s78
    %s98 = sphi 0, %s100
    %s101 = sphi 0, %s98
    %s102 = sphi 0, %s101
    %s118 = sphi 0, %s102
    %s124 = sphi 0, %s126
    %s127 = sphi 0, %s124
    %s128 = sphi 0, %s127
    %s144 = sphi 0, %s128
    %s150 = sphi 0, %s152
    %s153 = sphi 0, %s150
    %s154 = sphi 0, %s153
    %s170 = sphi 0, %s154
    %s176 = sphi 0, %s178
    %s179 = sphi 0, %s176
    %s180 = sphi 0, %s179
    %s196 = sphi 0, %s180
    %s202 = sphi 0, %s204
    %s205 = sphi 0, %s202
    %s206 = sphi 0, %s205
    %s222 = sphi 0, %s206
  $region4: #{net_forward.3} parent=0 // loop_header_branch
    %16 = sbr.rel (%p14) target = $region8
  $region5: #{net_forward.3} parent=0 // loop_body
    %s18 = ssub.s32 %s13, 1
    %s19 = ssub.s32 %s13, 2
    %s26 = sadd.s32 1, %s21
    %p27 = scmp.ge.s32.totalorder %s26, 1
    %s28 = scalar_select %p27, 0, %s26
    %s29 = sadd.s32 1, %s20
    %s30 = scalar_select %p27, %s29, %s20
    %p31 = scmp.ge.s32.totalorder %s30, 2
    %s32 = scalar_select %p31, 0, %s30
    %s34 = sadd.s32 %s33, 1
    %p37 = scmp.eq.s32.totalorder %s13, 1
    %p38 = scmp.ne.s32.totalorder %s33, %s35
    %p39 = scmp.eq.s32.totalorder %s13, 0
    %p40 = por %p38, %p39
    %p41 = scmp.ne.s32.totalorder %s33, %s35
    %p42 = scmp.eq.s32.totalorder %s18, 1
    %p43 = por %p41, %p42
    %p44 = scmp.ne.s32.totalorder %s35, %s36
    %p45 = scmp.eq.s32.totalorder %s18, 0
    %p46 = por %p44, %p45
    %p47 = scmp.ne.s32.totalorder %s35, %s36
    %p48 = scmp.eq.s32.totalorder %s19, 1
    %p49 = por %p47, %p48
    %p51 = scmp.ne.s32.totalorder %s36, %s50
    %p52 = scmp.eq.s32.totalorder %s19, 0
    %p53 = por %p51, %p52
    %s55 = sadd.s32 %s54, 1
    %p58 = scmp.eq.s32.totalorder %s13, 1
    %p59 = scmp.ne.s32.totalorder %s54, %s56
    %p60 = scmp.eq.s32.totalorder %s13, 0
    %p61 = por %p59, %p60
    %p62 = scmp.ne.s32.totalorder %s54, %s56
    %p63 = scmp.eq.s32.totalorder %s18, 1
    %p64 = por %p62, %p63
    %p65 = scmp.ne.s32.totalorder %s56, %s57
    %p66 = scmp.eq.s32.totalorder %s18, 0
    %p67 = por %p65, %p66
    %p68 = scmp.ne.s32.totalorder %s56, %s57
    %p69 = scmp.eq.s32.totalorder %s19, 1
    %p70 = por %p68, %p69
    %p72 = scmp.ne.s32.totalorder %s57, %s71
    %p73 = scmp.eq.s32.totalorder %s19, 0
    %p74 = por %p72, %p73
    %s76 = sadd.s32 %s75, 1
    %p79 = scmp.eq.s32.totalorder %s13, 1
    %p80 = scmp.ne.s32.totalorder %s75, %s77
    %p81 = scmp.eq.s32.totalorder %s13, 0
    %p82 = por %p80, %p81
    %p83 = scmp.ne.s32.totalorder %s75, %s77
    %p84 = scmp.eq.s32.totalorder %s18, 1
    %p85 = por %p83, %p84
    %p86 = scmp.ne.s32.totalorder %s77, %s78
    %p87 = scmp.eq.s32.totalorder %s18, 0
    %p88 = por %p86, %p87
    %p89 = scmp.ne.s32.totalorder %s77, %s78
    %p90 = scmp.eq.s32.totalorder %s19, 1
    %p91 = por %p89, %p90
    %p93 = scmp.ne.s32.totalorder %s78, %s92
    %p94 = scmp.eq.s32.totalorder %s19, 0
    %p95 = por %p93, %p94
    %s96 = ssub.s32 %s21, %s28
    %p97 = scmp.eq.s32.totalorder %s96, 0
    %s99 = sadd.s32 %s98, 1
    %s100 = scalar_select %p97, %s98, %s99
    %p103 = pneg %p97
    %p104 = scmp.eq.s32.totalorder %s13, 1
    %p105 = por %p103, %p104
    %p106 = scmp.ne.s32.totalorder %s98, %s101
    %p107 = scmp.eq.s32.totalorder %s13, 0
    %p108 = por %p106, %p107
    %p109 = scmp.ne.s32.totalorder %s98, %s101
    %p110 = scmp.eq.s32.totalorder %s18, 1
    %p111 = por %p109, %p110
    %p112 = scmp.ne.s32.totalorder %s101, %s102
    %p113 = scmp.eq.s32.totalorder %s18, 0
    %p114 = por %p112, %p113
    %p115 = scmp.ne.s32.totalorder %s101, %s102
    %p116 = scmp.eq.s32.totalorder %s19, 1
    %p117 = por %p115, %p116
    %p119 = scmp.ne.s32.totalorder %s102, %s118
    %p120 = scmp.eq.s32.totalorder %s19, 0
    %p121 = por %p119, %p120
    %s122 = ssub.s32 %s21, %s28
    %p123 = scmp.eq.s32.totalorder %s122, 0
    %s125 = sadd.s32 %s124, 1
    %s126 = scalar_select %p123, %s124, %s125
    %p129 = pneg %p123
    %p130 = scmp.eq.s32.totalorder %s13, 1
    %p131 = por %p129, %p130
    %p132 = scmp.ne.s32.totalorder %s124, %s127
    %p133 = scmp.eq.s32.totalorder %s13, 0
    %p134 = por %p132, %p133
    %p135 = scmp.ne.s32.totalorder %s124, %s127
    %p136 = scmp.eq.s32.totalorder %s18, 1
    %p137 = por %p135, %p136
    %p138 = scmp.ne.s32.totalorder %s127, %s128
    %p139 = scmp.eq.s32.totalorder %s18, 0
    %p140 = por %p138, %p139
    %p141 = scmp.ne.s32.totalorder %s127, %s128
    %p142 = scmp.eq.s32.totalorder %s19, 1
    %p143 = por %p141, %p142
    %p145 = scmp.ne.s32.totalorder %s128, %s144
    %p146 = scmp.eq.s32.totalorder %s19, 0
    %p147 = por %p145, %p146
    %s148 = ssub.s32 %s21, %s28
    %p149 = scmp.eq.s32.totalorder %s148, 0
    %s151 = sadd.s32 %s150, 1
    %s152 = scalar_select %p149, %s150, %s151
    %p155 = pneg %p149
    %p156 = scmp.eq.s32.totalorder %s13, 1
    %p157 = por %p155, %p156
    %p158 = scmp.ne.s32.totalorder %s150, %s153
    %p159 = scmp.eq.s32.totalorder %s13, 0
    %p160 = por %p158, %p159
    %p161 = scmp.ne.s32.totalorder %s150, %s153
    %p162 = scmp.eq.s32.totalorder %s18, 1
    %p163 = por %p161, %p162
    %p164 = scmp.ne.s32.totalorder %s153, %s154
    %p165 = scmp.eq.s32.totalorder %s18, 0
    %p166 = por %p164, %p165
    %p167 = scmp.ne.s32.totalorder %s153, %s154
    %p168 = scmp.eq.s32.totalorder %s19, 1
    %p169 = por %p167, %p168
    %p171 = scmp.ne.s32.totalorder %s154, %s170
    %p172 = scmp.eq.s32.totalorder %s19, 0
    %p173 = por %p171, %p172
    %s174 = ssub.s32 %s21, %s28
    %p175 = scmp.eq.s32.totalorder %s174, 0
    %s177 = sadd.s32 %s176, 1
    %s178 = scalar_select %p175, %s176, %s177
    %p181 = pneg %p175
    %p182 = scmp.eq.s32.totalorder %s13, 1
    %p183 = por %p181, %p182
    %p184 = scmp.ne.s32.totalorder %s176, %s179
    %p185 = scmp.eq.s32.totalorder %s13, 0
    %p186 = por %p184, %p185
    %p187 = scmp.ne.s32.totalorder %s176, %s179
    %p188 = scmp.eq.s32.totalorder %s18, 1
    %p189 = por %p187, %p188
    %p190 = scmp.ne.s32.totalorder %s179, %s180
    %p191 = scmp.eq.s32.totalorder %s18, 0
    %p192 = por %p190, %p191
    %p193 = scmp.ne.s32.totalorder %s179, %s180
    %p194 = scmp.eq.s32.totalorder %s19, 1
    %p195 = por %p193, %p194
    %p197 = scmp.ne.s32.totalorder %s180, %s196
    %p198 = scmp.eq.s32.totalorder %s19, 0
    %p199 = por %p197, %p198
    %s200 = ssub.s32 %s21, %s28
    %p201 = scmp.eq.s32.totalorder %s200, 0
    %s203 = sadd.s32 %s202, 1
    %s204 = scalar_select %p201, %s202, %s203
    %p207 = pneg %p201
    %p208 = scmp.eq.s32.totalorder %s13, 1
    %p209 = por %p207, %p208
    %p210 = scmp.ne.s32.totalorder %s202, %s205
    %p211 = scmp.eq.s32.totalorder %s13, 0
    %p212 = por %p210, %p211
    %p213 = scmp.ne.s32.totalorder %s202, %s205
    %p214 = scmp.eq.s32.totalorder %s18, 1
    %p215 = por %p213, %p214
    %p216 = scmp.ne.s32.totalorder %s205, %s206
    %p217 = scmp.eq.s32.totalorder %s18, 0
    %p218 = por %p216, %p217
    %p219 = scmp.ne.s32.totalorder %s205, %s206
    %p220 = scmp.eq.s32.totalorder %s19, 1
    %p221 = por %p219, %p220
    %p223 = scmp.ne.s32.totalorder %s206, %s222
    %p224 = scmp.eq.s32.totalorder %s19, 0
    %p225 = por %p223, %p224
    %p226 = scmp.le.s32.totalorder 1, %s13
    %p227 = scmp.lt.s32.totalorder %s13, 3
    %p228 = pnand %p226, %p227
    %p229 = pneg %p228
    // Predicated region
    $region9: #{net_forward.3} parent=5 // pred_check
      _
    $region10: #{net_forward.3} parent=5 // pred_check_branch
      %231 = sbr.rel (%p228) target = $region12
    $region11: #{net_forward.3} parent=5 // pred_region
      %s232 = ssub.s32 %s13, 1
      // Predicated region
      $region13: #{net_forward.3} parent=11 // pred_check
        %p233 = pneg %p46
      $region14: #{net_forward.3} parent=11 // pred_check_branch
        %235 = sbr.rel (%p233) target = $region16
      $region15: #{net_forward.3} parent=11 // pred_region
        _
      $region16: #{net_forward.3} parent=11 // pred_fallthru
        _
      // Predicated region
      $region17: #{net_forward.3} parent=11 // pred_check
        %p236 = pneg %p67
      $region18: #{net_forward.3} parent=11 // pred_check_branch
        %238 = sbr.rel (%p236) target = $region20
      $region19: #{net_forward.3} parent=11 // pred_region
        _
      $region20: #{net_forward.3} parent=11 // pred_fallthru
        _
      // Predicated region
      $region21: #{net_forward.3} parent=11 // pred_check
        %p239 = pneg %p88
      $region22: #{net_forward.3} parent=11 // pred_check_branch
        %241 = sbr.rel (%p239) target = $region24
      $region23: #{net_forward.3} parent=11 // pred_region
        _
      $region24: #{net_forward.3} parent=11 // pred_fallthru
        _
      // Predicated region
      $region25: #{net_forward.3} parent=11 // pred_check
        %p242 = pneg %p114
      $region26: #{net_forward.3} parent=11 // pred_check_branch
        %244 = sbr.rel (%p242) target = $region28
      $region27: #{net_forward.3} parent=11 // pred_region
        %s245 = smul.u32 4, %s23
        %p246 = scmp.lt.s32.totalorder %s245, 3
        %s247 = scalar_select %p246, %s245, 3
        %s248 = smul.addr %s247, 8
        %s249 = scalar_lea.vmem %s3, %s248
        %s250 = smul.u32 4, %s23
      $region28: #{net_forward.3} parent=11 // pred_fallthru
        _
      // Predicated region
      $region29: #{net_forward.3} parent=11 // pred_check
        %p251 = pneg %p140
      $region30: #{net_forward.3} parent=11 // pred_check_branch
        %253 = sbr.rel (%p251) target = $region32
      $region31: #{net_forward.3} parent=11 // pred_region
        %s254 = smul.u32 4, %s23
        %p255 = scmp.lt.s32.totalorder %s254, 3
        %s256 = scalar_select %p255, %s254, 3
        %s257 = smul.addr %s256, 8
        %s258 = scalar_lea.vmem %s4, %s257
        %s259 = smul.u32 4, %s23
      $region32: #{net_forward.3} parent=11 // pred_fallthru
        _
      // Predicated region
      $region33: #{net_forward.3} parent=11 // pred_check
        %p260 = pneg %p166
      $region34: #{net_forward.3} parent=11 // pred_check_branch
        %262 = sbr.rel (%p260) target = $region36
      $region35: #{net_forward.3} parent=11 // pred_region
        %s263 = smul.u32 4, %s23
        %p264 = scmp.lt.s32.totalorder %s263, 3
        %s265 = scalar_select %p264, %s263, 3
        %s266 = smul.addr %s265, 8
        %s267 = scalar_lea.vmem %s5, %s266
        %s268 = smul.u32 4, %s23
      $region36: #{net_forward.3} parent=11 // pred_fallthru
        _
      // Predicated region
      $region37: #{net_forward.3} parent=11 // pred_check
        %p269 = pneg %p192
      $region38: #{net_forward.3} parent=11 // pred_check_branch
        %271 = sbr.rel (%p269) target = $region40
      $region39: #{net_forward.3} parent=11 // pred_region
        %s272 = smul.u32 4, %s23
        %p273 = scmp.lt.s32.totalorder %s272, 3
        %s274 = scalar_select %p273, %s272, 3
        %s275 = smul.addr %s274, 8
        %s276 = scalar_lea.vmem %s6, %s275
        %s277 = smul.u32 4, %s23
      $region40: #{net_forward.3} parent=11 // pred_fallthru
        _
    $region12: #{net_forward.3} parent=5 // pred_fallthru
      _
    %p278 = scmp.lt.s32.totalorder %s13, 2
    // Predicated region
    $region41: #{net_forward.3} parent=5 // pred_check
      %p279 = pneg %p278
    $region42: #{net_forward.3} parent=5 // pred_check_branch
      %281 = sbr.rel (%p279) target = $region44
    $region43: #{net_forward.3} parent=5 // pred_region
      _
    $region44: #{net_forward.3} parent=5 // pred_fallthru
      _
    %p282 = scmp.le.s32.totalorder 1, %s13
    %p283 = scmp.lt.s32.totalorder %s13, 3
    %p284 = pnand %p282, %p283
    %p285 = pneg %p284
    // Predicated region
    $region45: #{net_forward.3} parent=5 // pred_check
      _
    $region46: #{net_forward.3} parent=5 // pred_check_branch
      %287 = sbr.rel (%p284) target = $region48
    $region47: #{net_forward.3} parent=5 // pred_region
      %s288 = ssub.s32 %s13, 1
      %p289 = pneg %p46
      %p290 = pneg %p43
      %p291 = pneg %p67
      %p292 = pneg %p64
      %p293 = pneg %p88
      %p294 = pneg %p85
      %s295 = smul.u32 4, %s23
      %p296 = scmp.lt.s32.totalorder %s295, 3
      %s297 = scalar_select %p296, %s295, 3
      %s298 = smul.addr %s297, 8
      %s299 = scalar_lea.vmem %s3, %s298
      %p300 = pneg %p114
      %p301 = pneg %p111
      %s302 = smul.u32 4, %s23
      %p303 = scmp.lt.s32.totalorder %s302, 3
      %s304 = scalar_select %p303, %s302, 3
      %s305 = smul.addr %s304, 8
      %s306 = scalar_lea.vmem %s4, %s305
      %p307 = pneg %p140
      %p308 = pneg %p137
      %s309 = smul.u32 4, %s23
      %p310 = scmp.lt.s32.totalorder %s309, 3
      %s311 = scalar_select %p310, %s309, 3
      %s312 = smul.addr %s311, 8
      %s313 = scalar_lea.vmem %s5, %s312
      %p314 = pneg %p166
      %p315 = pneg %p163
      %s316 = smul.u32 4, %s23
      %p317 = scmp.lt.s32.totalorder %s316, 3
      %s318 = scalar_select %p317, %s316, 3
      %s319 = smul.addr %s318, 8
      %s320 = scalar_lea.vmem %s6, %s319
      %p321 = pneg %p192
      %p322 = pneg %p189
      %p323 = pneg %p218
      %p324 = pneg %p215
      %s325 = smul.u32 4, %s23
      %p326 = scmp.lt.s32.totalorder %s325, 3
      %s327 = scalar_select %p326, %s325, 3
      %s328 = smul.addr %s327, 8
      %s329 = scalar_lea.vmem %s7, %s328
      %s330 = smul.u32 4, %s23
      %p331 = scmp.lt.s32.totalorder %s330, 3
      %s332 = scalar_select %p331, %s330, 3
      %s333 = smul.addr %s332, 8
      %s334 = scalar_lea.vmem %s3, %s333
      %s335 = smul.u32 4, %s23
      %s336 = smul.u32 4, %s23
      %p337 = scmp.lt.s32.totalorder %s336, 3
      %s338 = scalar_select %p337, %s336, 3
      %s339 = smul.addr %s338, 8
      %s340 = scalar_lea.vmem %s4, %s339
      %s341 = smul.u32 4, %s23
      %s342 = smul.u32 4, %s23
      %p343 = scmp.lt.s32.totalorder %s342, 3
      %s344 = scalar_select %p343, %s342, 3
      %s345 = smul.addr %s344, 8
      %s346 = scalar_lea.vmem %s5, %s345
      %s347 = smul.u32 4, %s23
      %s348 = smul.u32 4, %s23
      %p349 = scmp.lt.s32.totalorder %s348, 3
      %s350 = scalar_select %p349, %s348, 3
      %s351 = smul.addr %s350, 8
      %s352 = scalar_lea.vmem %s6, %s351
      %s353 = smul.u32 4, %s23
      %s354 = smul.u32 4, %s23
      %p355 = scmp.lt.s32.totalorder %s354, 3
      %s356 = scalar_select %p355, %s354, 3
      %s357 = smul.addr %s356, 8
      %s358 = scalar_lea.vmem %s7, %s357
      %s359 = smul.u32 4, %s23
      %p360 = scmp.eq.s32.totalorder %s22, 0
      %p361 = scmp.eq.s32.totalorder %s23, 0
      %p362 = pnand %p360, %p361
      %p363 = pneg %p362
      // Predicated region
      $region49: #{net_forward.3} parent=47 // pred_check
        _
      $region50: #{net_forward.3} parent=47 // pred_check_branch
        %365 = sbr.rel (%p362) target = $region52
      $region51: #{net_forward.3} parent=47 // pred_region
        %vm366 = vcmask 7168
        %367 = vst.msk [vmem:[#allocation2] sm:$0xff] %vm366, 0.0
        %368 = vst.msk [vmem:[#allocation3] sm:$0xff] %vm366, 0.0
      $region52: #{net_forward.3} parent=47 // pred_fallthru
        _
      %v369 = vld [vmem:[%s0] sm:$0xff]
      %v370 = vld [vmem:[%s334] sm:$0xff]
      %v371 = vld [vmem:[%s334 + $0x8] sm:$0xff]
      %v372 = vld [vmem:[%s334 + $0x10] sm:$0xff]
      %v373 = vld [vmem:[%s334 + $0x18] sm:$0xff]
      %v374 = vld [vmem:[%s334 + $0x20] sm:$0xff]
      %v375 = vld [vmem:[%s334 + $0x28] sm:$0xff]
      %v376 = vld [vmem:[%s334 + $0x30] sm:$0xff]
      %v377 = vld [vmem:[%s334 + $0x38] sm:$0xff]
      %vm378 = vcmask 130048
      %v380 = vsel %vm378, %v369, 0
      %382 = vmatpush.msra.mxu0 0.0
      %383 = vmatpush.msra.mxu0 0.0
      %384 = vmatpush.msra.mxu0 0.0
      %385 = vmatpush.msra.mxu0 0.0
      %386 = vmatpush.msra.mxu0 0.0
      %387 = vmatpush.msra.mxu0 0.0
      %388 = vmatpush.msra.mxu0 0.0
      %389 = vmatpush.msra.mxu0 0.0
      %390 = vmatpush.msra.mxu0 0.0
      %391 = vmatpush.msra.mxu0 0.0
      %392 = vmatpush.msra.mxu0 0.0
      %393 = vmatpush.msra.mxu0 0.0
      %394 = vmatpush.msra.mxu0 0.0
      %395 = vmatpush.msra.mxu0 0.0
      %396 = vmatpush.msra.mxu0 %v374
      %397 = vmatpush.msra.mxu0 %v370
      %398 = vmatmul.f32.gmra.mxu0 %v380
      %v399 = vpop.f32.mrf.mxu0
      %v400 = vadd.f32 0.0, %v399
      %401 = vdwg.mxu0
      %402 = vmatpush.msra.mxu0 0.0
      %403 = vmatpush.msra.mxu0 0.0
      %404 = vmatpush.msra.mxu0 0.0
      %405 = vmatpush.msra.mxu0 0.0
      %406 = vmatpush.msra.mxu0 0.0
      %407 = vmatpush.msra.mxu0 0.0
      %408 = vmatpush.msra.mxu0 0.0
      %409 = vmatpush.msra.mxu0 0.0
      %410 = vmatpush.msra.mxu0 0.0
      %411 = vmatpush.msra.mxu0 0.0
      %412 = vmatpush.msra.mxu0 0.0
      %413 = vmatpush.msra.mxu0 0.0
      %414 = vmatpush.msra.mxu0 0.0
      %415 = vmatpush.msra.mxu0 0.0
      %416 = vmatpush.msra.mxu0 %v375
      %417 = vmatpush.msra.mxu0 %v371
      %418 = vmatmul.f32.gmra.mxu0 %v380
      %v419 = vpop.f32.mrf.mxu0
      %v420 = vadd.f32 0.0, %v419
      %421 = vdwg.mxu0
      %422 = vmatpush.msra.mxu0 0.0
      %423 = vmatpush.msra.mxu0 0.0
      %424 = vmatpush.msra.mxu0 0.0
      %425 = vmatpush.msra.mxu0 0.0
      %426 = vmatpush.msra.mxu0 0.0
      %427 = vmatpush.msra.mxu0 0.0
      %428 = vmatpush.msra.mxu0 0.0
      %429 = vmatpush.msra.mxu0 0.0
      %430 = vmatpush.msra.mxu0 0.0
      %431 = vmatpush.msra.mxu0 0.0
      %432 = vmatpush.msra.mxu0 0.0
      %433 = vmatpush.msra.mxu0 0.0
      %434 = vmatpush.msra.mxu0 0.0
      %435 = vmatpush.msra.mxu0 0.0
      %436 = vmatpush.msra.mxu0 %v376
      %437 = vmatpush.msra.mxu0 %v372
      %438 = vmatmul.f32.gmra.mxu0 %v380
      %v439 = vpop.f32.mrf.mxu0
      %v440 = vadd.f32 0.0, %v439
      %441 = vdwg.mxu0
      %442 = vmatpush.msra.mxu0 0.0
      %443 = vmatpush.msra.mxu0 0.0
      %444 = vmatpush.msra.mxu0 0.0
      %445 = vmatpush.msra.mxu0 0.0
      %446 = vmatpush.msra.mxu0 0.0
      %447 = vmatpush.msra.mxu0 0.0
      %448 = vmatpush.msra.mxu0 0.0
      %449 = vmatpush.msra.mxu0 0.0
      %450 = vmatpush.msra.mxu0 0.0
      %451 = vmatpush.msra.mxu0 0.0
      %452 = vmatpush.msra.mxu0 0.0
      %453 = vmatpush.msra.mxu0 0.0
      %454 = vmatpush.msra.mxu0 0.0
      %455 = vmatpush.msra.mxu0 0.0
      %456 = vmatpush.msra.mxu0 %v377
      %457 = vmatpush.msra.mxu0 %v373
      %458 = vmatmul.f32.gmra.mxu0 %v380
      %v459 = vpop.f32.mrf.mxu0
      %v460 = vadd.f32 0.0, %v459
      %461 = vdwg.mxu0
      %v462 = vld [vmem:[%s340] sm:$0xff]
      %v463 = vld [vmem:[%s340 + $0x8] sm:$0xff]
      %v464 = vld [vmem:[%s340 + $0x10] sm:$0xff]
      %v465 = vld [vmem:[%s340 + $0x18] sm:$0xff]
      %v466 = vld [vmem:[%s340 + $0x20] sm:$0xff]
      %v467 = vld [vmem:[%s340 + $0x28] sm:$0xff]
      %v468 = vld [vmem:[%s340 + $0x30] sm:$0xff]
      %v469 = vld [vmem:[%s340 + $0x38] sm:$0xff]
      %470 = vmatpush.msra.mxu0 0.0
      %471 = vmatpush.msra.mxu0 0.0
      %472 = vmatpush.msra.mxu0 0.0
      %473 = vmatpush.msra.mxu0 0.0
      %474 = vmatpush.msra.mxu0 0.0
      %475 = vmatpush.msra.mxu0 0.0
      %476 = vmatpush.msra.mxu0 0.0
      %477 = vmatpush.msra.mxu0 0.0
      %478 = vmatpush.msra.mxu0 0.0
      %479 = vmatpush.msra.mxu0 0.0
      %480 = vmatpush.msra.mxu0 0.0
      %481 = vmatpush.msra.mxu0 0.0
      %482 = vmatpush.msra.mxu0 0.0
      %483 = vmatpush.msra.mxu0 0.0
      %484 = vmatpush.msra.mxu0 %v466
      %485 = vmatpush.msra.mxu0 %v462
      %486 = vmatmul.f32.gmra.mxu0 %v380
      %v487 = vpop.f32.mrf.mxu0
      %v488 = vadd.f32 0.0, %v487
      %489 = vdwg.mxu0
      %490 = vmatpush.msra.mxu0 0.0
      %491 = vmatpush.msra.mxu0 0.0
      %492 = vmatpush.msra.mxu0 0.0
      %493 = vmatpush.msra.mxu0 0.0
      %494 = vmatpush.msra.mxu0 0.0
      %495 = vmatpush.msra.mxu0 0.0
      %496 = vmatpush.msra.mxu0 0.0
      %497 = vmatpush.msra.mxu0 0.0
      %498 = vmatpush.msra.mxu0 0.0
      %499 = vmatpush.msra.mxu0 0.0
      %500 = vmatpush.msra.mxu0 0.0
      %501 = vmatpush.msra.mxu0 0.0
      %502 = vmatpush.msra.mxu0 0.0
      %503 = vmatpush.msra.mxu0 0.0
      %504 = vmatpush.msra.mxu0 %v467
      %505 = vmatpush.msra.mxu0 %v463
      %506 = vmatmul.f32.gmra.mxu0 %v380
      %v507 = vpop.f32.mrf.mxu0
      %v508 = vadd.f32 0.0, %v507
      %509 = vdwg.mxu0
      %510 = vmatpush.msra.mxu0 0.0
      %511 = vmatpush.msra.mxu0 0.0
      %512 = vmatpush.msra.mxu0 0.0
      %513 = vmatpush.msra.mxu0 0.0
      %514 = vmatpush.msra.mxu0 0.0
      %515 = vmatpush.msra.mxu0 0.0
      %516 = vmatpush.msra.mxu0 0.0
      %517 = vmatpush.msra.mxu0 0.0
      %518 = vmatpush.msra.mxu0 0.0
      %519 = vmatpush.msra.mxu0 0.0
      %520 = vmatpush.msra.mxu0 0.0
      %521 = vmatpush.msra.mxu0 0.0
      %522 = vmatpush.msra.mxu0 0.0
      %523 = vmatpush.msra.mxu0 0.0
      %524 = vmatpush.msra.mxu0 %v468
      %525 = vmatpush.msra.mxu0 %v464
      %526 = vmatmul.f32.gmra.mxu0 %v380
      %v527 = vpop.f32.mrf.mxu0
      %v528 = vadd.f32 0.0, %v527
      %529 = vdwg.mxu0
      %530 = vmatpush.msra.mxu0 0.0
      %531 = vmatpush.msra.mxu0 0.0
      %532 = vmatpush.msra.mxu0 0.0
      %533 = vmatpush.msra.mxu0 0.0
      %534 = vmatpush.msra.mxu0 0.0
      %535 = vmatpush.msra.mxu0 0.0
      %536 = vmatpush.msra.mxu0 0.0
      %537 = vmatpush.msra.mxu0 0.0
      %538 = vmatpush.msra.mxu0 0.0
      %539 = vmatpush.msra.mxu0 0.0
      %540 = vmatpush.msra.mxu0 0.0
      %541 = vmatpush.msra.mxu0 0.0
      %542 = vmatpush.msra.mxu0 0.0
      %543 = vmatpush.msra.mxu0 0.0
      %544 = vmatpush.msra.mxu0 %v469
      %545 = vmatpush.msra.mxu0 %v465
      %546 = vmatmul.f32.gmra.mxu0 %v380
      %v547 = vpop.f32.mrf.mxu0
      %v548 = vadd.f32 0.0, %v547
      %549 = vdwg.mxu0
      %v550 = vld [vmem:[%s346] sm:$0xff]
      %v551 = vld [vmem:[%s346 + $0x8] sm:$0xff]
      %v552 = vld [vmem:[%s346 + $0x10] sm:$0xff]
      %v553 = vld [vmem:[%s346 + $0x18] sm:$0xff]
      %v554 = vld [vmem:[%s346 + $0x20] sm:$0xff]
      %v555 = vld [vmem:[%s346 + $0x28] sm:$0xff]
      %v556 = vld [vmem:[%s346 + $0x30] sm:$0xff]
      %v557 = vld [vmem:[%s346 + $0x38] sm:$0xff]
      %558 = vmatpush.msra.mxu0 0.0
      %559 = vmatpush.msra.mxu0 0.0
      %560 = vmatpush.msra.mxu0 0.0
      %561 = vmatpush.msra.mxu0 0.0
      %562 = vmatpush.msra.mxu0 0.0
      %563 = vmatpush.msra.mxu0 0.0
      %564 = vmatpush.msra.mxu0 0.0
      %565 = vmatpush.msra.mxu0 0.0
      %566 = vmatpush.msra.mxu0 0.0
      %567 = vmatpush.msra.mxu0 0.0
      %568 = vmatpush.msra.mxu0 0.0
      %569 = vmatpush.msra.mxu0 0.0
      %570 = vmatpush.msra.mxu0 0.0
      %571 = vmatpush.msra.mxu0 0.0
      %572 = vmatpush.msra.mxu0 %v554
      %573 = vmatpush.msra.mxu0 %v550
      %574 = vmatmul.f32.gmra.mxu0 %v380
      %v575 = vpop.f32.mrf.mxu0
      %v576 = vadd.f32 0.0, %v575
      %577 = vdwg.mxu0
      %578 = vmatpush.msra.mxu0 0.0
      %579 = vmatpush.msra.mxu0 0.0
      %580 = vmatpush.msra.mxu0 0.0
      %581 = vmatpush.msra.mxu0 0.0
      %582 = vmatpush.msra.mxu0 0.0
      %583 = vmatpush.msra.mxu0 0.0
      %584 = vmatpush.msra.mxu0 0.0
      %585 = vmatpush.msra.mxu0 0.0
      %586 = vmatpush.msra.mxu0 0.0
      %587 = vmatpush.msra.mxu0 0.0
      %588 = vmatpush.msra.mxu0 0.0
      %589 = vmatpush.msra.mxu0 0.0
      %590 = vmatpush.msra.mxu0 0.0
      %591 = vmatpush.msra.mxu0 0.0
      %592 = vmatpush.msra.mxu0 %v555
      %593 = vmatpush.msra.mxu0 %v551
      %594 = vmatmul.f32.gmra.mxu0 %v380
      %v595 = vpop.f32.mrf.mxu0
      %v596 = vadd.f32 0.0, %v595
      %597 = vdwg.mxu0
      %598 = vmatpush.msra.mxu0 0.0
      %599 = vmatpush.msra.mxu0 0.0
      %600 = vmatpush.msra.mxu0 0.0
      %601 = vmatpush.msra.mxu0 0.0
      %602 = vmatpush.msra.mxu0 0.0
      %603 = vmatpush.msra.mxu0 0.0
      %604 = vmatpush.msra.mxu0 0.0
      %605 = vmatpush.msra.mxu0 0.0
      %606 = vmatpush.msra.mxu0 0.0
      %607 = vmatpush.msra.mxu0 0.0
      %608 = vmatpush.msra.mxu0 0.0
      %609 = vmatpush.msra.mxu0 0.0
      %610 = vmatpush.msra.mxu0 0.0
      %611 = vmatpush.msra.mxu0 0.0
      %612 = vmatpush.msra.mxu0 %v556
      %613 = vmatpush.msra.mxu0 %v552
      %614 = vmatmul.f32.gmra.mxu0 %v380
      %v615 = vpop.f32.mrf.mxu0
      %v616 = vadd.f32 0.0, %v615
      %617 = vdwg.mxu0
      %618 = vmatpush.msra.mxu0 0.0
      %619 = vmatpush.msra.mxu0 0.0
      %620 = vmatpush.msra.mxu0 0.0
      %621 = vmatpush.msra.mxu0 0.0
      %622 = vmatpush.msra.mxu0 0.0
      %623 = vmatpush.msra.mxu0 0.0
      %624 = vmatpush.msra.mxu0 0.0
      %625 = vmatpush.msra.mxu0 0.0
      %626 = vmatpush.msra.mxu0 0.0
      %627 = vmatpush.msra.mxu0 0.0
      %628 = vmatpush.msra.mxu0 0.0
      %629 = vmatpush.msra.mxu0 0.0
      %630 = vmatpush.msra.mxu0 0.0
      %631 = vmatpush.msra.mxu0 0.0
      %632 = vmatpush.msra.mxu0 %v557
      %633 = vmatpush.msra.mxu0 %v553
      %634 = vmatmul.f32.gmra.mxu0 %v380
      %v635 = vpop.f32.mrf.mxu0
      %v636 = vadd.f32 0.0, %v635
      %637 = vdwg.mxu0
      %v638 = vld [vmem:[%s352] sm:$0xff]
      %v639 = vld [vmem:[%s352 + $0x8] sm:$0xff]
      %v640 = vld [vmem:[%s352 + $0x10] sm:$0xff]
      %v641 = vld [vmem:[%s352 + $0x18] sm:$0xff]
      %v642 = vld [vmem:[%s352 + $0x20] sm:$0xff]
      %v643 = vld [vmem:[%s352 + $0x28] sm:$0xff]
      %v644 = vld [vmem:[%s352 + $0x30] sm:$0xff]
      %v645 = vld [vmem:[%s352 + $0x38] sm:$0xff]
      %646 = vmatpush.msra.mxu0 0.0
      %647 = vmatpush.msra.mxu0 0.0
      %648 = vmatpush.msra.mxu0 0.0
      %649 = vmatpush.msra.mxu0 0.0
      %650 = vmatpush.msra.mxu0 0.0
      %651 = vmatpush.msra.mxu0 0.0
      %652 = vmatpush.msra.mxu0 0.0
      %653 = vmatpush.msra.mxu0 0.0
      %654 = vmatpush.msra.mxu0 0.0
      %655 = vmatpush.msra.mxu0 0.0
      %656 = vmatpush.msra.mxu0 0.0
      %657 = vmatpush.msra.mxu0 0.0
      %658 = vmatpush.msra.mxu0 0.0
      %659 = vmatpush.msra.mxu0 0.0
      %660 = vmatpush.msra.mxu0 %v642
      %661 = vmatpush.msra.mxu0 %v638
      %662 = vmatmul.f32.gmra.mxu0 %v380
      %v663 = vpop.f32.mrf.mxu0
      %v664 = vadd.f32 0.0, %v663
      %665 = vdwg.mxu0
      %666 = vmatpush.msra.mxu0 0.0
      %667 = vmatpush.msra.mxu0 0.0
      %668 = vmatpush.msra.mxu0 0.0
      %669 = vmatpush.msra.mxu0 0.0
      %670 = vmatpush.msra.mxu0 0.0
      %671 = vmatpush.msra.mxu0 0.0
      %672 = vmatpush.msra.mxu0 0.0
      %673 = vmatpush.msra.mxu0 0.0
      %674 = vmatpush.msra.mxu0 0.0
      %675 = vmatpush.msra.mxu0 0.0
      %676 = vmatpush.msra.mxu0 0.0
      %677 = vmatpush.msra.mxu0 0.0
      %678 = vmatpush.msra.mxu0 0.0
      %679 = vmatpush.msra.mxu0 0.0
      %680 = vmatpush.msra.mxu0 %v643
      %681 = vmatpush.msra.mxu0 %v639
      %682 = vmatmul.f32.gmra.mxu0 %v380
      %v683 = vpop.f32.mrf.mxu0
      %v684 = vadd.f32 0.0, %v683
      %685 = vdwg.mxu0
      %686 = vmatpush.msra.mxu0 0.0
      %687 = vmatpush.msra.mxu0 0.0
      %688 = vmatpush.msra.mxu0 0.0
      %689 = vmatpush.msra.mxu0 0.0
      %690 = vmatpush.msra.mxu0 0.0
      %691 = vmatpush.msra.mxu0 0.0
      %692 = vmatpush.msra.mxu0 0.0
      %693 = vmatpush.msra.mxu0 0.0
      %694 = vmatpush.msra.mxu0 0.0
      %695 = vmatpush.msra.mxu0 0.0
      %696 = vmatpush.msra.mxu0 0.0
      %697 = vmatpush.msra.mxu0 0.0
      %698 = vmatpush.msra.mxu0 0.0
      %699 = vmatpush.msra.mxu0 0.0
      %700 = vmatpush.msra.mxu0 %v644
      %701 = vmatpush.msra.mxu0 %v640
      %702 = vmatmul.f32.gmra.mxu0 %v380
      %v703 = vpop.f32.mrf.mxu0
      %v704 = vadd.f32 0.0, %v703
      %705 = vdwg.mxu0
      %706 = vmatpush.msra.mxu0 0.0
      %707 = vmatpush.msra.mxu0 0.0
      %708 = vmatpush.msra.mxu0 0.0
      %709 = vmatpush.msra.mxu0 0.0
      %710 = vmatpush.msra.mxu0 0.0
      %711 = vmatpush.msra.mxu0 0.0
      %712 = vmatpush.msra.mxu0 0.0
      %713 = vmatpush.msra.mxu0 0.0
      %714 = vmatpush.msra.mxu0 0.0
      %715 = vmatpush.msra.mxu0 0.0
      %716 = vmatpush.msra.mxu0 0.0
      %717 = vmatpush.msra.mxu0 0.0
      %718 = vmatpush.msra.mxu0 0.0
      %719 = vmatpush.msra.mxu0 0.0
      %720 = vmatpush.msra.mxu0 %v645
      %721 = vmatpush.msra.mxu0 %v641
      %722 = vmatmul.f32.gmra.mxu0 %v380
      %v723 = vpop.f32.mrf.mxu0
      %v724 = vadd.f32 0.0, %v723
      %725 = vdwg.mxu0
      // Predicated region
      $region53: #{net_forward.3} parent=47 // pred_check
        %p726 = pneg %p360
      $region54: #{net_forward.3} parent=47 // pred_check_branch
        %728 = sbr.rel (%p726) target = $region56
      $region55: #{net_forward.3} parent=47 // pred_region
        %v729 = vadd.f32 %v400, %v488
        %v730 = vadd.f32 %v420, %v508
        %v731 = vadd.f32 %v440, %v528
        %v732 = vadd.f32 %v460, %v548
        %v733 = vadd.f32 %v729, %v576
        %v734 = vadd.f32 %v730, %v596
        %v735 = vadd.f32 %v731, %v616
        %v736 = vadd.f32 %v732, %v636
        %v737 = vadd.f32 %v733, %v664
        %v738 = vadd.f32 %v734, %v684
        %v739 = vadd.f32 %v735, %v704
        %v740 = vadd.f32 %v736, %v724
        %v741 = vmul.f32 %v400, %v400
        %v742 = vmul.f32 %v420, %v420
        %v743 = vmul.f32 %v440, %v440
        %v744 = vmul.f32 %v460, %v460
        %v745 = vmul.f32 %v488, %v488
        %v746 = vmul.f32 %v508, %v508
        %v747 = vmul.f32 %v528, %v528
        %v748 = vmul.f32 %v548, %v548
        %v749 = vadd.f32 %v741, %v745
        %v750 = vadd.f32 %v742, %v746
        %v751 = vadd.f32 %v743, %v747
        %v752 = vadd.f32 %v744, %v748
        %v753 = vmul.f32 %v576, %v576
        %v754 = vmul.f32 %v596, %v596
        %v755 = vmul.f32 %v616, %v616
        %v756 = vmul.f32 %v636, %v636
        %v757 = vadd.f32 %v749, %v753
        %v758 = vadd.f32 %v750, %v754
        %v759 = vadd.f32 %v751, %v755
        %v760 = vadd.f32 %v752, %v756
        %v761 = vmul.f32 %v664, %v664
        %v762 = vmul.f32 %v684, %v684
        %v763 = vmul.f32 %v704, %v704
        %v764 = vmul.f32 %v724, %v724
        %v765 = vadd.f32 %v757, %v761
        %v766 = vadd.f32 %v758, %v762
        %v767 = vadd.f32 %v759, %v763
        %v768 = vadd.f32 %v760, %v764
        %v769 = vld [vmem:[#allocation2] sm:$0xff]
        %v770 = vadd.f32 %v737, %v738
        %v771 = vadd.f32 %v770, %v739
        %v772 = vadd.f32 %v771, %v740
        %773 = vadd.xlane.f32.xlu0 %v772
        %v774 = vpop.xlane.xlu0 %773
        %v775 = vadd.f32 %v769, %v774
        %vm776 = vcmask 7168
        %777 = vst.msk [vmem:[#allocation2] sm:$0xff] %vm776, %v775
        %v778 = vld [vmem:[#allocation3] sm:$0xff]
        %v779 = vadd.f32 %v765, %v766
        %v780 = vadd.f32 %v779, %v767
        %v781 = vadd.f32 %v780, %v768
        %782 = vadd.xlane.f32.xlu0 %v781
        %v783 = vpop.xlane.xlu0 %782
        %v784 = vadd.f32 %v778, %v783
        %785 = vst.msk [vmem:[#allocation3] sm:$0xff] %vm776, %v784
      $region56: #{net_forward.3} parent=47 // pred_fallthru
        _
      %p786 = scmp.eq.s32.totalorder %s22, 1
      // Predicated region
      $region57: #{net_forward.3} parent=47 // pred_check
        %p787 = pneg %p786
      $region58: #{net_forward.3} parent=47 // pred_check_branch
        %789 = sbr.rel (%p787) target = $region60
      $region59: #{net_forward.3} parent=47 // pred_region
        %v790 = vld [vmem:[#allocation2] sm:$0xff]
        %v791 = vmul.f32 %v790, 0.0006377551
        %v792 = vld [vmem:[#allocation3] sm:$0xff]
        %v793 = vmul.f32 %v792, 0.0006377551
        %v794 = vmul.f32 %v791, %v791
        %v795 = vsub.f32 %v793, %v794
        %v796 = vmax.f32 %v795, 0.0
        %v797 = vld [vmem:[%s1] sm:$0xff]
        %v798 = vadd.f32 %v796, 1e-05
        %v799 = vrsqrt.pop %v798
        %v800 = vmul.f32 %v799, %v798
        %v801 = vmul.f32 %v800, %v799
        %v802 = vmul.f32 0.5, %v801
        %v803 = vsub.f32 1.5, %v802
        %v804 = vmul.f32 %v799, %v803
        %vm805 = vweird.f32 %v798
        %vm806 = vweird.f32 %v799
        %vm807 = vmor %vm805, %vm806
        %v808 = vsel %vm807, %v799, %v804
        %v809 = vmul.f32 %v797, %v808
        %v810 = vld [vmem:[%s2] sm:$0xff]
        %v811 = vmul.f32 %v791, %v809
        %v812 = vsub.f32 %v810, %v811
        %814 = vset.pattern.permute.xlu0 0
        %815 = vperm.xlu0 %814, %v809
        %v816 = vpop.permute.xlu0 %815
        %v818 = vmul.f32 %v400, %v816
        %v819 = vmul.f32 %v420, %v816
        %v820 = vmul.f32 %v440, %v816
        %v821 = vmul.f32 %v460, %v816
        %v822 = vmul.f32 %v488, %v816
        %v823 = vmul.f32 %v508, %v816
        %v824 = vmul.f32 %v528, %v816
        %v825 = vmul.f32 %v548, %v816
        %v826 = vmax.f32 %v818, %v822
        %v827 = vmax.f32 %v819, %v823
        %v828 = vmax.f32 %v820, %v824
        %v829 = vmax.f32 %v821, %v825
        %v830 = vmul.f32 %v576, %v816
        %v831 = vmul.f32 %v596, %v816
        %v832 = vmul.f32 %v616, %v816
        %v833 = vmul.f32 %v636, %v816
        %v834 = vmul.f32 %v664, %v816
        %v835 = vmul.f32 %v684, %v816
        %v836 = vmul.f32 %v704, %v816
        %v837 = vmul.f32 %v724, %v816
        %v838 = vmax.f32 %v830, %v834
        %v839 = vmax.f32 %v831, %v835
        %v840 = vmax.f32 %v832, %v836
        %v841 = vmax.f32 %v833, %v837
        %v842 = vmax.f32 %v826, %v838
        %v843 = vmax.f32 %v827, %v839
        %v844 = vmax.f32 %v828, %v840
        %v845 = vmax.f32 %v829, %v841
        %847 = vset.pattern.permute.xlu0 0
        %848 = vperm.xlu0 %847, %v812
        %v849 = vpop.permute.xlu0 %848
        %v851 = vadd.f32 %v842, %v849
        %v852 = vadd.f32 %v843, %v849
        %v853 = vadd.f32 %v844, %v849
        %v854 = vadd.f32 %v845, %v849
        %v855 = vmax.f32 %v851, 0.0
        %v856 = vmax.f32 %v852, 0.0
        %v857 = vmax.f32 %v853, 0.0
        %v858 = vmax.f32 %v854, 0.0
        %859 = vst [vmem:[%s358] sm:$0xff] %v855
        %860 = vst [vmem:[%s358 + $0x8] sm:$0xff] %v856
        %861 = vst [vmem:[%s358 + $0x10] sm:$0xff] %v857
        %862 = vst [vmem:[%s358 + $0x18] sm:$0xff] %v858
      $region60: #{net_forward.3} parent=47 // pred_fallthru
        _
      %s863 = smul.u32 4, %s23
      %p864 = scmp.lt.s32.totalorder %s863, 3
      %s865 = scalar_select %p864, %s863, 3
      %s866 = smul.addr %s865, 8
      %s867 = scalar_lea.vmem %s7, %s866
      // Predicated region
      $region61: #{net_forward.3} parent=47 // pred_check
        %p868 = pneg %p215
      $region62: #{net_forward.3} parent=47 // pred_check_branch
        %870 = sbr.rel (%p868) target = $region64
      $region63: #{net_forward.3} parent=47 // pred_region
        %s871 = smul.u32 4, %s23
      $region64: #{net_forward.3} parent=47 // pred_fallthru
        _
      // Predicated region
      $region65: #{net_forward.3} parent=47 // pred_check
        %p872 = pneg %p215
      $region66: #{net_forward.3} parent=47 // pred_check_branch
        %874 = sbr.rel (%p872) target = $region68
      $region67: #{net_forward.3} parent=47 // pred_region
        %s875 = smul.u32 4, %s23
        %p876 = scmp.lt.s32.totalorder %s875, 3
        %s877 = scalar_select %p876, %s875, 3
        %s878 = smul.addr %s877, 8
        %s879 = scalar_lea.vmem %s7, %s878
      $region68: #{net_forward.3} parent=47 // pred_fallthru
        _
    $region48: #{net_forward.3} parent=5 // pred_fallthru
      _
    %p880 = scmp.le.s32.totalorder 2, %s13
    // Predicated region
    $region69: #{net_forward.3} parent=5 // pred_check
      %p881 = pneg %p880
    $region70: #{net_forward.3} parent=5 // pred_check_branch
      %883 = sbr.rel (%p881) target = $region72
    $region71: #{net_forward.3} parent=5 // pred_region
      %s884 = ssub.s32 %s13, 2
    $region72: #{net_forward.3} parent=5 // pred_fallthru
      _
  $region6: #{net_forward.3} parent=0 // loop_footer
    %s17 = sadd.s32 1, %s13
  $region7: #{net_forward.3} parent=0 // loop_footer_branch
    %12 = sbr.rel target = $region3
  $region8: #{net_forward.3} parent=0 // loop_exit
    _

// kernel: net_forward.4
$region0: #{net_forward.4}
  #allocation0 [shape = 'u32[]', space=smem, size = 0x4, offset = 0x4, fixed_abs, tag = 'smem constant byte address 0x4 - core index']
  #allocation1 [shape = 'u32[72,128]{1,0:T(1,128)}', space=vmem, size = 0x9000, scoped, tag = 'internal scratch']
  #allocation2 [shape = 'f32[8,1]{1,0:T(8,128)}', space=vmem, size = 0x1000, scoped, tag = 'scratch operand']
  #allocation3 [shape = 'f32[8,1]{1,0:T(8,128)}', space=vmem, size = 0x1000, scoped, tag = 'scratch operand']
  %s0 = inlined_call_operand.vmem [shape: f32[8,40], index: 0, kind: input, shape index: {}]
  %s1 = inlined_call_operand.vmem [shape: f32[8,1], index: 1, kind: input, shape index: {}]
  %s2 = inlined_call_operand.vmem [shape: f32[8,1], index: 2, kind: input, shape index: {}]
  %s3 = inlined_call_operand.vmem [shape: f32[40,128], index: 3, kind: input, shape index: {}]
  %s4 = inlined_call_operand.vmem [shape: f32[40,128], index: 4, kind: input, shape index: {}]
  %s5 = inlined_call_operand.vmem [shape: f32[40,128], index: 5, kind: input, shape index: {}]
  %s6 = inlined_call_operand.vmem [shape: f32[40,128], index: 6, kind: input, shape index: {}]
  %s7 = inlined_call_operand.vmem [shape: f32[8,128], index: 7, kind: output, shape index: {}]
  %s8 = sld [smem:[#allocation0]]
  $region73: #{net_forward.4} parent=0
    _
  %s10 = ssub.s32 1, %s8
  %s11 = scalar_select 0, %s10, %s8
  loop: start=0, step=1, limit=4
  $region2: #{net_forward.4} parent=0 // loop_pre_header
    _
  $region3: #{net_forward.4} parent=0 // loop_header
    %s13 = sphi 0, %s17
    %p14 = scmp.ge.s32.totalorder %s13, 4
    %s20 = sphi 0, %s32
    %s21 = sphi 0, %s28
    %s22 = sphi 0, %s20
    %s23 = sphi 0, %s21
    %s24 = sphi 0, %s22
    %s25 = sphi 0, %s23
    %s33 = sphi 0, %s33
    %s35 = sphi 0, %s33
    %s36 = sphi 0, %s35
    %s50 = sphi 0, %s36
    %s54 = sphi 0, %s54
    %s56 = sphi 0, %s54
    %s57 = sphi 0, %s56
    %s71 = sphi 0, %s57
    %s75 = sphi 0, %s75
    %s77 = sphi 0, %s75
    %s78 = sphi 0, %s77
    %s92 = sphi 0, %s78
    %s98 = sphi 0, %s100
    %s101 = sphi 0, %s98
    %s102 = sphi 0, %s101
    %s118 = sphi 0, %s102
    %s124 = sphi 0, %s126
    %s127 = sphi 0, %s124
    %s128 = sphi 0, %s127
    %s144 = sphi 0, %s128
    %s150 = sphi 0, %s152
    %s153 = sphi 0, %s150
    %s154 = sphi 0, %s153
    %s170 = sphi 0, %s154
    %s176 = sphi 0, %s178
    %s179 = sphi 0, %s176
    %s180 = sphi 0, %s179
    %s196 = sphi 0, %s180
    %s202 = sphi 0, %s204
    %s205 = sphi 0, %s202
    %s206 = sphi 0, %s205
    %s222 = sphi 0, %s206
  $region4: #{net_forward.4} parent=0 // loop_header_branch
    %16 = sbr.rel (%p14) target = $region8
  $region5: #{net_forward.4} parent=0 // loop_body
    %s18 = ssub.s32 %s13, 1
    %s19 = ssub.s32 %s13, 2
    %s26 = sadd.s32 1, %s21
    %p27 = scmp.ge.s32.totalorder %s26, 1
    %s28 = scalar_select %p27, 0, %s26
    %s29 = sadd.s32 1, %s20
    %s30 = scalar_select %p27, %s29, %s20
    %p31 = scmp.ge.s32.totalorder %s30, 2
    %s32 = scalar_select %p31, 0, %s30
    %s34 = sadd.s32 %s33, 1
    %p37 = scmp.eq.s32.totalorder %s13, 1
    %p38 = scmp.ne.s32.totalorder %s33, %s35
    %p39 = scmp.eq.s32.totalorder %s13, 0
    %p40 = por %p38, %p39
    %p41 = scmp.ne.s32.totalorder %s33, %s35
    %p42 = scmp.eq.s32.totalorder %s18, 1
    %p43 = por %p41, %p42
    %p44 = scmp.ne.s32.totalorder %s35, %s36
    %p45 = scmp.eq.s32.totalorder %s18, 0
    %p46 = por %p44, %p45
    %p47 = scmp.ne.s32.totalorder %s35, %s36
    %p48 = scmp.eq.s32.totalorder %s19, 1
    %p49 = por %p47, %p48
    %p51 = scmp.ne.s32.totalorder %s36, %s50
    %p52 = scmp.eq.s32.totalorder %s19, 0
    %p53 = por %p51, %p52
    %s55 = sadd.s32 %s54, 1
    %p58 = scmp.eq.s32.totalorder %s13, 1
    %p59 = scmp.ne.s32.totalorder %s54, %s56
    %p60 = scmp.eq.s32.totalorder %s13, 0
    %p61 = por %p59, %p60
    %p62 = scmp.ne.s32.totalorder %s54, %s56
    %p63 = scmp.eq.s32.totalorder %s18, 1
    %p64 = por %p62, %p63
    %p65 = scmp.ne.s32.totalorder %s56, %s57
    %p66 = scmp.eq.s32.totalorder %s18, 0
    %p67 = por %p65, %p66
    %p68 = scmp.ne.s32.totalorder %s56, %s57
    %p69 = scmp.eq.s32.totalorder %s19, 1
    %p70 = por %p68, %p69
    %p72 = scmp.ne.s32.totalorder %s57, %s71
    %p73 = scmp.eq.s32.totalorder %s19, 0
    %p74 = por %p72, %p73
    %s76 = sadd.s32 %s75, 1
    %p79 = scmp.eq.s32.totalorder %s13, 1
    %p80 = scmp.ne.s32.totalorder %s75, %s77
    %p81 = scmp.eq.s32.totalorder %s13, 0
    %p82 = por %p80, %p81
    %p83 = scmp.ne.s32.totalorder %s75, %s77
    %p84 = scmp.eq.s32.totalorder %s18, 1
    %p85 = por %p83, %p84
    %p86 = scmp.ne.s32.totalorder %s77, %s78
    %p87 = scmp.eq.s32.totalorder %s18, 0
    %p88 = por %p86, %p87
    %p89 = scmp.ne.s32.totalorder %s77, %s78
    %p90 = scmp.eq.s32.totalorder %s19, 1
    %p91 = por %p89, %p90
    %p93 = scmp.ne.s32.totalorder %s78, %s92
    %p94 = scmp.eq.s32.totalorder %s19, 0
    %p95 = por %p93, %p94
    %s96 = ssub.s32 %s21, %s28
    %p97 = scmp.eq.s32.totalorder %s96, 0
    %s99 = sadd.s32 %s98, 1
    %s100 = scalar_select %p97, %s98, %s99
    %p103 = pneg %p97
    %p104 = scmp.eq.s32.totalorder %s13, 1
    %p105 = por %p103, %p104
    %p106 = scmp.ne.s32.totalorder %s98, %s101
    %p107 = scmp.eq.s32.totalorder %s13, 0
    %p108 = por %p106, %p107
    %p109 = scmp.ne.s32.totalorder %s98, %s101
    %p110 = scmp.eq.s32.totalorder %s18, 1
    %p111 = por %p109, %p110
    %p112 = scmp.ne.s32.totalorder %s101, %s102
    %p113 = scmp.eq.s32.totalorder %s18, 0
    %p114 = por %p112, %p113
    %p115 = scmp.ne.s32.totalorder %s101, %s102
    %p116 = scmp.eq.s32.totalorder %s19, 1
    %p117 = por %p115, %p116
    %p119 = scmp.ne.s32.totalorder %s102, %s118
    %p120 = scmp.eq.s32.totalorder %s19, 0
    %p121 = por %p119, %p120
    %s122 = ssub.s32 %s21, %s28
    %p123 = scmp.eq.s32.totalorder %s122, 0
    %s125 = sadd.s32 %s124, 1
    %s126 = scalar_select %p123, %s124, %s125
    %p129 = pneg %p123
    %p130 = scmp.eq.s32.totalorder %s13, 1
    %p131 = por %p129, %p130
    %p132 = scmp.ne.s32.totalorder %s124, %s127
    %p133 = scmp.eq.s32.totalorder %s13, 0
    %p134 = por %p132, %p133
    %p135 = scmp.ne.s32.totalorder %s124, %s127
    %p136 = scmp.eq.s32.totalorder %s18, 1
    %p137 = por %p135, %p136
    %p138 = scmp.ne.s32.totalorder %s127, %s128
    %p139 = scmp.eq.s32.totalorder %s18, 0
    %p140 = por %p138, %p139
    %p141 = scmp.ne.s32.totalorder %s127, %s128
    %p142 = scmp.eq.s32.totalorder %s19, 1
    %p143 = por %p141, %p142
    %p145 = scmp.ne.s32.totalorder %s128, %s144
    %p146 = scmp.eq.s32.totalorder %s19, 0
    %p147 = por %p145, %p146
    %s148 = ssub.s32 %s21, %s28
    %p149 = scmp.eq.s32.totalorder %s148, 0
    %s151 = sadd.s32 %s150, 1
    %s152 = scalar_select %p149, %s150, %s151
    %p155 = pneg %p149
    %p156 = scmp.eq.s32.totalorder %s13, 1
    %p157 = por %p155, %p156
    %p158 = scmp.ne.s32.totalorder %s150, %s153
    %p159 = scmp.eq.s32.totalorder %s13, 0
    %p160 = por %p158, %p159
    %p161 = scmp.ne.s32.totalorder %s150, %s153
    %p162 = scmp.eq.s32.totalorder %s18, 1
    %p163 = por %p161, %p162
    %p164 = scmp.ne.s32.totalorder %s153, %s154
    %p165 = scmp.eq.s32.totalorder %s18, 0
    %p166 = por %p164, %p165
    %p167 = scmp.ne.s32.totalorder %s153, %s154
    %p168 = scmp.eq.s32.totalorder %s19, 1
    %p169 = por %p167, %p168
    %p171 = scmp.ne.s32.totalorder %s154, %s170
    %p172 = scmp.eq.s32.totalorder %s19, 0
    %p173 = por %p171, %p172
    %s174 = ssub.s32 %s21, %s28
    %p175 = scmp.eq.s32.totalorder %s174, 0
    %s177 = sadd.s32 %s176, 1
    %s178 = scalar_select %p175, %s176, %s177
    %p181 = pneg %p175
    %p182 = scmp.eq.s32.totalorder %s13, 1
    %p183 = por %p181, %p182
    %p184 = scmp.ne.s32.totalorder %s176, %s179
    %p185 = scmp.eq.s32.totalorder %s13, 0
    %p186 = por %p184, %p185
    %p187 = scmp.ne.s32.totalorder %s176, %s179
    %p188 = scmp.eq.s32.totalorder %s18, 1
    %p189 = por %p187, %p188
    %p190 = scmp.ne.s32.totalorder %s179, %s180
    %p191 = scmp.eq.s32.totalorder %s18, 0
    %p192 = por %p190, %p191
    %p193 = scmp.ne.s32.totalorder %s179, %s180
    %p194 = scmp.eq.s32.totalorder %s19, 1
    %p195 = por %p193, %p194
    %p197 = scmp.ne.s32.totalorder %s180, %s196
    %p198 = scmp.eq.s32.totalorder %s19, 0
    %p199 = por %p197, %p198
    %s200 = ssub.s32 %s21, %s28
    %p201 = scmp.eq.s32.totalorder %s200, 0
    %s203 = sadd.s32 %s202, 1
    %s204 = scalar_select %p201, %s202, %s203
    %p207 = pneg %p201
    %p208 = scmp.eq.s32.totalorder %s13, 1
    %p209 = por %p207, %p208
    %p210 = scmp.ne.s32.totalorder %s202, %s205
    %p211 = scmp.eq.s32.totalorder %s13, 0
    %p212 = por %p210, %p211
    %p213 = scmp.ne.s32.totalorder %s202, %s205
    %p214 = scmp.eq.s32.totalorder %s18, 1
    %p215 = por %p213, %p214
    %p216 = scmp.ne.s32.totalorder %s205, %s206
    %p217 = scmp.eq.s32.totalorder %s18, 0
    %p218 = por %p216, %p217
    %p219 = scmp.ne.s32.totalorder %s205, %s206
    %p220 = scmp.eq.s32.totalorder %s19, 1
    %p221 = por %p219, %p220
    %p223 = scmp.ne.s32.totalorder %s206, %s222
    %p224 = scmp.eq.s32.totalorder %s19, 0
    %p225 = por %p223, %p224
    %p226 = scmp.le.s32.totalorder 1, %s13
    %p227 = scmp.lt.s32.totalorder %s13, 3
    %p228 = pnand %p226, %p227
    %p229 = pneg %p228
    // Predicated region
    $region9: #{net_forward.4} parent=5 // pred_check
      _
    $region10: #{net_forward.4} parent=5 // pred_check_branch
      %231 = sbr.rel (%p228) target = $region12
    $region11: #{net_forward.4} parent=5 // pred_region
      %s232 = ssub.s32 %s13, 1
      // Predicated region
      $region13: #{net_forward.4} parent=11 // pred_check
        %p233 = pneg %p46
      $region14: #{net_forward.4} parent=11 // pred_check_branch
        %235 = sbr.rel (%p233) target = $region16
      $region15: #{net_forward.4} parent=11 // pred_region
        _
      $region16: #{net_forward.4} parent=11 // pred_fallthru
        _
      // Predicated region
      $region17: #{net_forward.4} parent=11 // pred_check
        %p236 = pneg %p67
      $region18: #{net_forward.4} parent=11 // pred_check_branch
        %238 = sbr.rel (%p236) target = $region20
      $region19: #{net_forward.4} parent=11 // pred_region
        _
      $region20: #{net_forward.4} parent=11 // pred_fallthru
        _
      // Predicated region
      $region21: #{net_forward.4} parent=11 // pred_check
        %p239 = pneg %p88
      $region22: #{net_forward.4} parent=11 // pred_check_branch
        %241 = sbr.rel (%p239) target = $region24
      $region23: #{net_forward.4} parent=11 // pred_region
        _
      $region24: #{net_forward.4} parent=11 // pred_fallthru
        _
      // Predicated region
      $region25: #{net_forward.4} parent=11 // pred_check
        %p242 = pneg %p114
      $region26: #{net_forward.4} parent=11 // pred_check_branch
        %244 = sbr.rel (%p242) target = $region28
      $region27: #{net_forward.4} parent=11 // pred_region
        %p245 = scmp.lt.s32.totalorder %s23, 0
        %s246 = scalar_select %p245, %s23, 0
        %s247 = smul.addr %s246, 8
        %s248 = scalar_lea.vmem %s3, %s247
      $region28: #{net_forward.4} parent=11 // pred_fallthru
        _
      // Predicated region
      $region29: #{net_forward.4} parent=11 // pred_check
        %p249 = pneg %p140
      $region30: #{net_forward.4} parent=11 // pred_check_branch
        %251 = sbr.rel (%p249) target = $region32
      $region31: #{net_forward.4} parent=11 // pred_region
        %p252 = scmp.lt.s32.totalorder %s23, 0
        %s253 = scalar_select %p252, %s23, 0
        %s254 = smul.addr %s253, 8
        %s255 = scalar_lea.vmem %s4, %s254
      $region32: #{net_forward.4} parent=11 // pred_fallthru
        _
      // Predicated region
      $region33: #{net_forward.4} parent=11 // pred_check
        %p256 = pneg %p166
      $region34: #{net_forward.4} parent=11 // pred_check_branch
        %258 = sbr.rel (%p256) target = $region36
      $region35: #{net_forward.4} parent=11 // pred_region
        %p259 = scmp.lt.s32.totalorder %s23, 0
        %s260 = scalar_select %p259, %s23, 0
        %s261 = smul.addr %s260, 8
        %s262 = scalar_lea.vmem %s5, %s261
      $region36: #{net_forward.4} parent=11 // pred_fallthru
        _
      // Predicated region
      $region37: #{net_forward.4} parent=11 // pred_check
        %p263 = pneg %p192
      $region38: #{net_forward.4} parent=11 // pred_check_branch
        %265 = sbr.rel (%p263) target = $region40
      $region39: #{net_forward.4} parent=11 // pred_region
        %p266 = scmp.lt.s32.totalorder %s23, 0
        %s267 = scalar_select %p266, %s23, 0
        %s268 = smul.addr %s267, 8
        %s269 = scalar_lea.vmem %s6, %s268
      $region40: #{net_forward.4} parent=11 // pred_fallthru
        _
    $region12: #{net_forward.4} parent=5 // pred_fallthru
      _
    %p270 = scmp.lt.s32.totalorder %s13, 2
    // Predicated region
    $region41: #{net_forward.4} parent=5 // pred_check
      %p271 = pneg %p270
    $region42: #{net_forward.4} parent=5 // pred_check_branch
      %273 = sbr.rel (%p271) target = $region44
    $region43: #{net_forward.4} parent=5 // pred_region
      _
    $region44: #{net_forward.4} parent=5 // pred_fallthru
      _
    %p274 = scmp.le.s32.totalorder 1, %s13
    %p275 = scmp.lt.s32.totalorder %s13, 3
    %p276 = pnand %p274, %p275
    %p277 = pneg %p276
    // Predicated region
    $region45: #{net_forward.4} parent=5 // pred_check
      _
    $region46: #{net_forward.4} parent=5 // pred_check_branch
      %279 = sbr.rel (%p276) target = $region48
    $region47: #{net_forward.4} parent=5 // pred_region
      %s280 = ssub.s32 %s13, 1
      %p281 = pneg %p46
      %p282 = pneg %p43
      %p283 = pneg %p67
      %p284 = pneg %p64
      %p285 = pneg %p88
      %p286 = pneg %p85
      %p287 = scmp.lt.s32.totalorder %s23, 0
      %s288 = scalar_select %p287, %s23, 0
      %s289 = smul.addr %s288, 8
      %s290 = scalar_lea.vmem %s3, %s289
      %p291 = pneg %p114
      %p292 = pneg %p111
      %p293 = scmp.lt.s32.totalorder %s23, 0
      %s294 = scalar_select %p293, %s23, 0
      %s295 = smul.addr %s294, 8
      %s296 = scalar_lea.vmem %s4, %s295
      %p297 = pneg %p140
      %p298 = pneg %p137
      %p299 = scmp.lt.s32.totalorder %s23, 0
      %s300 = scalar_select %p299, %s23, 0
      %s301 = smul.addr %s300, 8
      %s302 = scalar_lea.vmem %s5, %s301
      %p303 = pneg %p166
      %p304 = pneg %p163
      %p305 = scmp.lt.s32.totalorder %s23, 0
      %s306 = scalar_select %p305, %s23, 0
      %s307 = smul.addr %s306, 8
      %s308 = scalar_lea.vmem %s6, %s307
      %p309 = pneg %p192
      %p310 = pneg %p189
      %p311 = pneg %p218
      %p312 = pneg %p215
      %p313 = scmp.lt.s32.totalorder %s23, 0
      %s314 = scalar_select %p313, %s23, 0
      %s315 = smul.addr %s314, 8
      %s316 = scalar_lea.vmem %s7, %s315
      %p317 = scmp.lt.s32.totalorder %s23, 0
      %s318 = scalar_select %p317, %s23, 0
      %s319 = smul.addr %s318, 8
      %s320 = scalar_lea.vmem %s3, %s319
      %p321 = scmp.lt.s32.totalorder %s23, 0
      %s322 = scalar_select %p321, %s23, 0
      %s323 = smul.addr %s322, 8
      %s324 = scalar_lea.vmem %s4, %s323
      %p325 = scmp.lt.s32.totalorder %s23, 0
      %s326 = scalar_select %p325, %s23, 0
      %s327 = smul.addr %s326, 8
      %s328 = scalar_lea.vmem %s5, %s327
      %p329 = scmp.lt.s32.totalorder %s23, 0
      %s330 = scalar_select %p329, %s23, 0
      %s331 = smul.addr %s330, 8
      %s332 = scalar_lea.vmem %s6, %s331
      %p333 = scmp.lt.s32.totalorder %s23, 0
      %s334 = scalar_select %p333, %s23, 0
      %s335 = smul.addr %s334, 8
      %s336 = scalar_lea.vmem %s7, %s335
      %p337 = scmp.eq.s32.totalorder %s22, 0
      %p338 = scmp.eq.s32.totalorder %s23, 0
      %p339 = pnand %p337, %p338
      %p340 = pneg %p339
      // Predicated region
      $region49: #{net_forward.4} parent=47 // pred_check
        _
      $region50: #{net_forward.4} parent=47 // pred_check_branch
        %342 = sbr.rel (%p339) target = $region52
      $region51: #{net_forward.4} parent=47 // pred_region
        %vm343 = vcmask 7168
        %344 = vst.msk [vmem:[#allocation2] sm:$0xff] %vm343, 0.0
        %345 = vst.msk [vmem:[#allocation3] sm:$0xff] %vm343, 0.0
      $region52: #{net_forward.4} parent=47 // pred_fallthru
        _
      %v346 = vld [vmem:[%s0] sm:$0xff]
      %v347 = vld [vmem:[%s320] sm:$0xff]
      %v348 = vld [vmem:[%s320 + $0x8] sm:$0xff]
      %v349 = vld [vmem:[%s320 + $0x10] sm:$0xff]
      %v350 = vld [vmem:[%s320 + $0x18] sm:$0xff]
      %v351 = vld [vmem:[%s320 + $0x20] sm:$0xff]
      %vm352 = vcmask 326656
      %v354 = vsel %vm352, %v346, 0
      %356 = vmatpush.msra.mxu0 0.0
      %357 = vmatpush.msra.mxu0 0.0
      %358 = vmatpush.msra.mxu0 0.0
      %359 = vmatpush.msra.mxu0 0.0
      %360 = vmatpush.msra.mxu0 0.0
      %361 = vmatpush.msra.mxu0 0.0
      %362 = vmatpush.msra.mxu0 0.0
      %363 = vmatpush.msra.mxu0 0.0
      %364 = vmatpush.msra.mxu0 0.0
      %365 = vmatpush.msra.mxu0 0.0
      %366 = vmatpush.msra.mxu0 0.0
      %367 = vmatpush.msra.mxu0 %v351
      %368 = vmatpush.msra.mxu0 %v350
      %369 = vmatpush.msra.mxu0 %v349
      %370 = vmatpush.msra.mxu0 %v348
      %371 = vmatpush.msra.mxu0 %v347
      %372 = vmatmul.f32.gmra.mxu0 %v354
      %v373 = vpop.f32.mrf.mxu0
      %v374 = vadd.f32 0.0, %v373
      %375 = vdwg.mxu0
      %v376 = vld [vmem:[%s324] sm:$0xff]
      %v377 = vld [vmem:[%s324 + $0x8] sm:$0xff]
      %v378 = vld [vmem:[%s324 + $0x10] sm:$0xff]
      %v379 = vld [vmem:[%s324 + $0x18] sm:$0xff]
      %v380 = vld [vmem:[%s324 + $0x20] sm:$0xff]
      %381 = vmatpush.msra.mxu0 0.0
      %382 = vmatpush.msra.mxu0 0.0
      %383 = vmatpush.msra.mxu0 0.0
      %384 = vmatpush.msra.mxu0 0.0
      %385 = vmatpush.msra.mxu0 0.0
      %386 = vmatpush.msra.mxu0 0.0
      %387 = vmatpush.msra.mxu0 0.0
      %388 = vmatpush.msra.mxu0 0.0
      %389 = vmatpush.msra.mxu0 0.0
      %390 = vmatpush.msra.mxu0 0.0
      %391 = vmatpush.msra.mxu0 0.0
      %392 = vmatpush.msra.mxu0 %v380
      %393 = vmatpush.msra.mxu0 %v379
      %394 = vmatpush.msra.mxu0 %v378
      %395 = vmatpush.msra.mxu0 %v377
      %396 = vmatpush.msra.mxu0 %v376
      %397 = vmatmul.f32.gmra.mxu0 %v354
      %v398 = vpop.f32.mrf.mxu0
      %v399 = vadd.f32 0.0, %v398
      %400 = vdwg.mxu0
      %v401 = vld [vmem:[%s328] sm:$0xff]
      %v402 = vld [vmem:[%s328 + $0x8] sm:$0xff]
      %v403 = vld [vmem:[%s328 + $0x10] sm:$0xff]
      %v404 = vld [vmem:[%s328 + $0x18] sm:$0xff]
      %v405 = vld [vmem:[%s328 + $0x20] sm:$0xff]
      %406 = vmatpush.msra.mxu0 0.0
      %407 = vmatpush.msra.mxu0 0.0
      %408 = vmatpush.msra.mxu0 0.0
      %409 = vmatpush.msra.mxu0 0.0
      %410 = vmatpush.msra.mxu0 0.0
      %411 = vmatpush.msra.mxu0 0.0
      %412 = vmatpush.msra.mxu0 0.0
      %413 = vmatpush.msra.mxu0 0.0
      %414 = vmatpush.msra.mxu0 0.0
      %415 = vmatpush.msra.mxu0 0.0
      %416 = vmatpush.msra.mxu0 0.0
      %417 = vmatpush.msra.mxu0 %v405
      %418 = vmatpush.msra.mxu0 %v404
      %419 = vmatpush.msra.mxu0 %v403
      %420 = vmatpush.msra.mxu0 %v402
      %421 = vmatpush.msra.mxu0 %v401
      %422 = vmatmul.f32.gmra.mxu0 %v354
      %v423 = vpop.f32.mrf.mxu0
      %v424 = vadd.f32 0.0, %v423
      %425 = vdwg.mxu0
      %v426 = vld [vmem:[%s332] sm:$0xff]
      %v427 = vld [vmem:[%s332 + $0x8] sm:$0xff]
      %v428 = vld [vmem:[%s332 + $0x10] sm:$0xff]
      %v429 = vld [vmem:[%s332 + $0x18] sm:$0xff]
      %v430 = vld [vmem:[%s332 + $0x20] sm:$0xff]
      %431 = vmatpush.msra.mxu0 0.0
      %432 = vmatpush.msra.mxu0 0.0
      %433 = vmatpush.msra.mxu0 0.0
      %434 = vmatpush.msra.mxu0 0.0
      %435 = vmatpush.msra.mxu0 0.0
      %436 = vmatpush.msra.mxu0 0.0
      %437 = vmatpush.msra.mxu0 0.0
      %438 = vmatpush.msra.mxu0 0.0
      %439 = vmatpush.msra.mxu0 0.0
      %440 = vmatpush.msra.mxu0 0.0
      %441 = vmatpush.msra.mxu0 0.0
      %442 = vmatpush.msra.mxu0 %v430
      %443 = vmatpush.msra.mxu0 %v429
      %444 = vmatpush.msra.mxu0 %v428
      %445 = vmatpush.msra.mxu0 %v427
      %446 = vmatpush.msra.mxu0 %v426
      %447 = vmatmul.f32.gmra.mxu0 %v354
      %v448 = vpop.f32.mrf.mxu0
      %v449 = vadd.f32 0.0, %v448
      %450 = vdwg.mxu0
      // Predicated region
      $region53: #{net_forward.4} parent=47 // pred_check
        %p451 = pneg %p337
      $region54: #{net_forward.4} parent=47 // pred_check_branch
        %453 = sbr.rel (%p451) target = $region56
      $region55: #{net_forward.4} parent=47 // pred_region
        %v454 = vadd.f32 %v374, %v399
        %v455 = vadd.f32 %v454, %v424
        %v456 = vadd.f32 %v455, %v449
        %v457 = vmul.f32 %v374, %v374
        %v458 = vmul.f32 %v399, %v399
        %v459 = vadd.f32 %v457, %v458
        %v460 = vmul.f32 %v424, %v424
        %v461 = vadd.f32 %v459, %v460
        %v462 = vmul.f32 %v449, %v449
        %v463 = vadd.f32 %v461, %v462
        %v464 = vld [vmem:[#allocation2] sm:$0xff]
        %465 = vadd.xlane.f32.xlu0 %v456
        %v466 = vpop.xlane.xlu0 %465
        %v467 = vadd.f32 %v464, %v466
        %vm468 = vcmask 7168
        %469 = vst.msk [vmem:[#allocation2] sm:$0xff] %vm468, %v467
        %v470 = vld [vmem:[#allocation3] sm:$0xff]
        %471 = vadd.xlane.f32.xlu0 %v463
        %v472 = vpop.xlane.xlu0 %471
        %v473 = vadd.f32 %v470, %v472
        %474 = vst.msk [vmem:[#allocation3] sm:$0xff] %vm468, %v473
      $region56: #{net_forward.4} parent=47 // pred_fallthru
        _
      %p475 = scmp.eq.s32.totalorder %s22, 1
      // Predicated region
      $region57: #{net_forward.4} parent=47 // pred_check
        %p476 = pneg %p475
      $region58: #{net_forward.4} parent=47 // pred_check_branch
        %478 = sbr.rel (%p476) target = $region60
      $region59: #{net_forward.4} parent=47 // pred_region
        %v479 = vld [vmem:[#allocation2] sm:$0xff]
        %v480 = vmul.f32 %v479, 0.0025510204
        %v481 = vld [vmem:[#allocation3] sm:$0xff]
        %v482 = vmul.f32 %v481, 0.0025510204
        %v483 = vmul.f32 %v480, %v480
        %v484 = vsub.f32 %v482, %v483
        %v485 = vmax.f32 %v484, 0.0
        %v486 = vld [vmem:[%s1] sm:$0xff]
        %v487 = vadd.f32 %v485, 1e-05
        %v488 = vrsqrt.pop %v487
        %v489 = vmul.f32 %v488, %v487
        %v490 = vmul.f32 %v489, %v488
        %v491 = vmul.f32 0.5, %v490
        %v492 = vsub.f32 1.5, %v491
        %v493 = vmul.f32 %v488, %v492
        %vm494 = vweird.f32 %v487
        %vm495 = vweird.f32 %v488
        %vm496 = vmor %vm494, %vm495
        %v497 = vsel %vm496, %v488, %v493
        %v498 = vmul.f32 %v486, %v497
        %v499 = vld [vmem:[%s2] sm:$0xff]
        %v500 = vmul.f32 %v480, %v498
        %v501 = vsub.f32 %v499, %v500
        %503 = vset.pattern.permute.xlu0 0
        %504 = vperm.xlu0 %503, %v498
        %v505 = vpop.permute.xlu0 %504
        %v507 = vmul.f32 %v374, %v505
        %v508 = vmul.f32 %v399, %v505
        %v509 = vmax.f32 %v507, %v508
        %v510 = vmul.f32 %v424, %v505
        %v511 = vmul.f32 %v449, %v505
        %v512 = vmax.f32 %v510, %v511
        %v513 = vmax.f32 %v509, %v512
        %515 = vset.pattern.permute.xlu0 0
        %516 = vperm.xlu0 %515, %v501
        %v517 = vpop.permute.xlu0 %516
        %v519 = vadd.f32 %v513, %v517
        %v520 = vmax.f32 %v519, 0.0
        %521 = vst [vmem:[%s336] sm:$0xff] %v520
      $region60: #{net_forward.4} parent=47 // pred_fallthru
        _
      %p522 = scmp.lt.s32.totalorder %s23, 0
      %s523 = scalar_select %p522, %s23, 0
      %s524 = smul.addr %s523, 8
      %s525 = scalar_lea.vmem %s7, %s524
      // Predicated region
      $region61: #{net_forward.4} parent=47 // pred_check
        %p526 = pneg %p215
      $region62: #{net_forward.4} parent=47 // pred_check_branch
        %528 = sbr.rel (%p526) target = $region64
      $region63: #{net_forward.4} parent=47 // pred_region
        _
      $region64: #{net_forward.4} parent=47 // pred_fallthru
        _
      // Predicated region
      $region65: #{net_forward.4} parent=47 // pred_check
        %p529 = pneg %p215
      $region66: #{net_forward.4} parent=47 // pred_check_branch
        %531 = sbr.rel (%p529) target = $region68
      $region67: #{net_forward.4} parent=47 // pred_region
        %p532 = scmp.lt.s32.totalorder %s23, 0
        %s533 = scalar_select %p532, %s23, 0
        %s534 = smul.addr %s533, 8
        %s535 = scalar_lea.vmem %s7, %s534
      $region68: #{net_forward.4} parent=47 // pred_fallthru
        _
    $region48: #{net_forward.4} parent=5 // pred_fallthru
      _
    %p536 = scmp.le.s32.totalorder 2, %s13
    // Predicated region
    $region69: #{net_forward.4} parent=5 // pred_check
      %p537 = pneg %p536
    $region70: #{net_forward.4} parent=5 // pred_check_branch
      %539 = sbr.rel (%p537) target = $region72
    $region71: #{net_forward.4} parent=5 // pred_region
      %s540 = ssub.s32 %s13, 2
    $region72: #{net_forward.4} parent=5 // pred_fallthru
      _
  $region6: #{net_forward.4} parent=0 // loop_footer
    %s17 = sadd.s32 1, %s13
  $region7: #{net_forward.4} parent=0 // loop_footer_branch
    %12 = sbr.rel target = $region3
  $region8: #{net_forward.4} parent=0 // loop_exit
    _

// kernel: net_forward.5
$region0: #{net_forward.5}
  #allocation0 [shape = 'u32[]', space=smem, size = 0x4, offset = 0x4, fixed_abs, tag = 'smem constant byte address 0x4 - core index']
  #allocation1 [shape = 'u32[72,128]{1,0:T(1,128)}', space=vmem, size = 0x9000, scoped, tag = 'internal scratch']
  %s0 = inlined_call_operand.vmem [shape: f32[8,196], index: 0, kind: input, shape index: {}]
  %s1 = inlined_call_operand.vmem [shape: f32[196,128], index: 1, kind: input, shape index: {}]
  %s2 = inlined_call_operand.vmem [shape: f32[1,128], index: 2, kind: input, shape index: {}]
  %s3 = inlined_call_operand.vmem [shape: f32[8,128], index: 3, kind: output, shape index: {}]
  %s4 = sld [smem:[#allocation0]]
  $region22: #{net_forward.5} parent=0
    _
  %s6 = ssub.s32 1, %s4
  %s7 = scalar_select 0, %s6, %s4
  // Predicated region
  $region2: #{net_forward.5} parent=0 // pred_check
    _
  $region3: #{net_forward.5} parent=0 // pred_check_branch
    %9 = sbr.rel (0) target = $region5
  $region4: #{net_forward.5} parent=0 // pred_region
    _
  $region5: #{net_forward.5} parent=0 // pred_fallthru
    _
  // Predicated region
  $region6: #{net_forward.5} parent=0 // pred_check
    _
  $region7: #{net_forward.5} parent=0 // pred_check_branch
    %11 = sbr.rel (0) target = $region9
  $region8: #{net_forward.5} parent=0 // pred_region
    _
  $region9: #{net_forward.5} parent=0 // pred_fallthru
    _
  // Predicated region
  $region10: #{net_forward.5} parent=0 // pred_check
    _
  $region11: #{net_forward.5} parent=0 // pred_check_branch
    %13 = sbr.rel (0) target = $region13
  $region12: #{net_forward.5} parent=0 // pred_region
    _
  $region13: #{net_forward.5} parent=0 // pred_fallthru
    _
  %v14 = vld [vmem:[%s0] sm:$0xff]
  %v15 = vld [vmem:[%s0 + $0x8] sm:$0xff]
  %v16 = vld [vmem:[%s1] sm:$0xff]
  %v17 = vld [vmem:[%s1 + $0x8] sm:$0xff]
  %v18 = vld [vmem:[%s1 + $0x10] sm:$0xff]
  %v19 = vld [vmem:[%s1 + $0x18] sm:$0xff]
  %v20 = vld [vmem:[%s1 + $0x20] sm:$0xff]
  %v21 = vld [vmem:[%s1 + $0x28] sm:$0xff]
  %v22 = vld [vmem:[%s1 + $0x30] sm:$0xff]
  %v23 = vld [vmem:[%s1 + $0x38] sm:$0xff]
  %v24 = vld [vmem:[%s1 + $0x40] sm:$0xff]
  %v25 = vld [vmem:[%s1 + $0x48] sm:$0xff]
  %v26 = vld [vmem:[%s1 + $0x50] sm:$0xff]
  %v27 = vld [vmem:[%s1 + $0x58] sm:$0xff]
  %v28 = vld [vmem:[%s1 + $0x60] sm:$0xff]
  %v29 = vld [vmem:[%s1 + $0x68] sm:$0xff]
  %v30 = vld [vmem:[%s1 + $0x70] sm:$0xff]
  %v31 = vld [vmem:[%s1 + $0x78] sm:$0xff]
  %v32 = vld [vmem:[%s1 + $0x80] sm:$0xff]
  %v33 = vld [vmem:[%s1 + $0x88] sm:$0xff]
  %v34 = vld [vmem:[%s1 + $0x90] sm:$0xff]
  %v35 = vld [vmem:[%s1 + $0x98] sm:$0xff]
  %v36 = vld [vmem:[%s1 + $0xa0] sm:$0xff]
  %v37 = vld [vmem:[%s1 + $0xa8] sm:$0xff]
  %v38 = vld [vmem:[%s1 + $0xb0] sm:$0xff]
  %v39 = vld [vmem:[%s1 + $0xb8] sm:$0xff]
  %v40 = vld [vmem:[%s1 + $0xc0] sm:$0xf]
  %v41 = vld [vmem:[%s2] sm:$0x1]
  %v43 = vperm.slane %v41, 0
  %vm45 = vcmask 556032
  %v47 = vsel %vm45, %v15, 0
  %vm49 = vcmask 1043456
  %v51 = vsel %vm49, %v40, 0
  %53 = vmatpush.msra.mxu0 %v31
  %54 = vmatpush.msra.mxu0 %v30
  %55 = vmatpush.msra.mxu0 %v29
  %56 = vmatpush.msra.mxu0 %v28
  %57 = vmatpush.msra.mxu0 %v27
  %58 = vmatpush.msra.mxu0 %v26
  %59 = vmatpush.msra.mxu0 %v25
  %60 = vmatpush.msra.mxu0 %v24
  %61 = vmatpush.msra.mxu0 %v23
  %62 = vmatpush.msra.mxu0 %v22
  %63 = vmatpush.msra.mxu0 %v21
  %64 = vmatpush.msra.mxu0 %v20
  %65 = vmatpush.msra.mxu0 %v19
  %66 = vmatpush.msra.mxu0 %v18
  %67 = vmatpush.msra.mxu0 %v17
  %68 = vmatpush.msra.mxu0 %v16
  %69 = vmatmul.f32.gmra.mxu0 %v14
  %v70 = vpop.f32.mrf.mxu0
  %v71 = vadd.f32 %v43, %v70
  %72 = vdwg.mxu0
  %73 = vmatpush.msra.mxu0 0.0
  %74 = vmatpush.msra.mxu0 0.0
  %75 = vmatpush.msra.mxu0 0.0
  %76 = vmatpush.msra.mxu0 0.0
  %77 = vmatpush.msra.mxu0 0.0
  %78 = vmatpush.msra.mxu0 0.0
  %79 = vmatpush.msra.mxu0 0.0
  %80 = vmatpush.msra.mxu0 %v51
  %81 = vmatpush.msra.mxu0 %v39
  %82 = vmatpush.msra.mxu0 %v38
  %83 = vmatpush.msra.mxu0 %v37
  %84 = vmatpush.msra.mxu0 %v36
  %85 = vmatpush.msra.mxu0 %v35
  %86 = vmatpush.msra.mxu0 %v34
  %87 = vmatpush.msra.mxu0 %v33
  %88 = vmatpush.msra.mxu0 %v32
  %89 = vmatmul.f32.gmra.mxu0 %v47
  %v90 = vpop.f32.mrf.mxu0
  %v91 = vadd.f32 %v71, %v90
  %92 = vdwg.mxu0
  %93 = vst [vmem:[%s3] sm:$0xff] %v91
  // Predicated region
  $region14: #{net_forward.5} parent=0 // pred_check
    _
  $region15: #{net_forward.5} parent=0 // pred_check_branch
    %95 = sbr.rel (0) target = $region17
  $region16: #{net_forward.5} parent=0 // pred_region
    _
  $region17: #{net_forward.5} parent=0 // pred_fallthru
    _
  // Predicated region
  $region18: #{net_forward.5} parent=0 // pred_check
    _
  $region19: #{net_forward.5} parent=0 // pred_check_branch
    %97 = sbr.rel (0) target = $region21
  $region20: #{net_forward.5} parent=0 // pred_region
    _
  $region21: #{net_forward.5} parent=0 // pred_fallthru
    _

</llo_original>
